<compile_context>
chip_gen: v6e
topology: v6e:2x2x1
jax: 0.10.0
libtpu: 0.0.40
codegen_flags: <defaults>
</compile_context>

<pallas_src>
import jax
import jax.numpy as jnp
import numpy as np
from jax.experimental import pallas as pl
from jax.experimental.pallas import tpu as pltpu


def _round_up(x, m):
    return ((x + m - 1) // m) * m


def _bpnet_kernel(xO_ref, dOO_ref, dHO_ref, xH_ref, dHH_ref, dOH_ref,
                  w1O_ref, b1O_ref, w2O_ref, b2O_ref, w3O_ref,
                  w1H_ref, b1H_ref, w2H_ref, b2H_ref, w3H_ref,
                  out_ref):
    f32 = jnp.float32
    tb, lanes = out_ref.shape            # molecules per tile, output lane width (128)

    def element_net(x_ref, dA_ref, dB_ref, w1_ref, b1_ref, w2_ref, b2_ref):
        r = x_ref.shape[0]               # tile_b * n_atoms rows
        na = r // tb
        n3 = w2_ref.shape[-1]
        # Fuse the three operands sharing w1 along the M axis -> one MXU push.
        stack1 = jnp.concatenate([x_ref[...], dA_ref[...], dB_ref[...]], axis=0)
        h1 = jnp.dot(stack1, w1_ref[...], preferred_element_type=f32)      # (3r, n2)
        t1 = jnp.tanh(h1[:r] + b1_ref[...])
        s1 = 1.0 - t1 * t1               # sech^2(z1): no exp, no divide
        stack2 = jnp.concatenate([t1, h1[r:2 * r] * s1, h1[2 * r:] * s1], axis=0)
        h2 = jnp.dot(stack2, w2_ref[...], preferred_element_type=f32)      # (3r, n3)
        t2 = jnp.tanh(h2[:r] + b2_ref[...])
        s2 = 1.0 - t2 * t2               # sech^2(z2)
        # Per-molecule atom sums for the A and B derivative channels, done as one
        # fused sublane reduction over a (2*tb, na, n3) view (no segment matrix).
        ap2 = jnp.concatenate([h2[r:2 * r] * s2, h2[2 * r:] * s2], axis=0)  # (2r, n3)
        s_both = ap2.reshape(2 * tb, na, n3).sum(axis=1)                    # (2tb, n3)
        return s_both[:tb], s_both[tb:]                                     # sA, sB

    sOO, sHO = element_net(xO_ref, dOO_ref, dHO_ref, w1O_ref, b1O_ref, w2O_ref, b2O_ref)
    sHH, sOH = element_net(xH_ref, dHH_ref, dOH_ref, w1H_ref, b1H_ref, w2H_ref, b2H_ref)

    # Final w3 contraction as a lane multiply + one fused cross-lane reduce for both
    # outputs (w3 passed transposed, shape (1, n3)).
    comb = jnp.concatenate([sOO * w3O_ref[...] + sOH * w3H_ref[...],     # rows 0..tb-1 -> y_O
                            sHO * w3O_ref[...] + sHH * w3H_ref[...]],    # rows tb..2tb-1 -> y_H
                           axis=0)
    y_all = jnp.sum(comb, axis=-1, keepdims=True)                         # (2tb, 1)
    yO = y_all[:tb]
    yH = y_all[tb:]

    # Lane-dense combined output: lane 0 = y_O, lane 1 = y_H, rest zero.
    lane = jax.lax.broadcasted_iota(jnp.int32, (tb, lanes), 1)
    out_ref[...] = jnp.where(lane == 0, yO, jnp.where(lane == 1, yH, 0.0))


def bpnet_forward(params, x_O, x_H, dx_OO, dx_HO, dx_OH, dx_HH, *, tile_b=8):
    """tile_b = molecules per grid step (multiple of 8). Raise to 256-512 at scale."""
    B, nO, FO = x_O.shape
    _, nH, FH = x_H.shape
    nO_p, nH_p = _round_up(nO, 8), _round_up(nH, 8)
    B_p = _round_up(B, tile_b)

    def prep(a, n_p):
        a = a.astype(jnp.float32)
        a = jnp.pad(a, ((0, B_p - a.shape[0]), (0, n_p - a.shape[1]), (0, 0)))
        return a.reshape(B_p * n_p, a.shape[-1])     # rows grouped by molecule

    xO, dOO, dHO = prep(x_O, nO_p), prep(dx_OO, nO_p), prep(dx_HO, nO_p)
    xH, dHH, dOH = prep(x_H, nH_p), prep(dx_HH, nH_p), prep(dx_OH, nH_p)

    f32 = jnp.float32
    w1O = params["w1_O"].astype(f32); b1O = params["b1_O"].reshape(1, -1).astype(f32)
    w2O = params["w2_O"].astype(f32); b2O = params["b2_O"].reshape(1, -1).astype(f32)
    w3O = params["w3_O"].reshape(1, -1).astype(f32)            # (1, n3) for lane contraction
    w1H = params["w1_H"].astype(f32); b1H = params["b1_H"].reshape(1, -1).astype(f32)
    w2H = params["w2_H"].astype(f32); b2H = params["b2_H"].reshape(1, -1).astype(f32)
    w3H = params["w3_H"].reshape(1, -1).astype(f32)

    n2O, n3O = w1O.shape[1], w2O.shape[1]
    n2H, n3H = w1H.shape[1], w2H.shape[1]

    def desc_spec(n_atoms, feat):
        return pl.BlockSpec((tile_b * n_atoms, feat), lambda m: (m, 0))

    def wspec(shape):
        return pl.BlockSpec(shape, lambda m: (0, 0))   # resident across the grid

    out = pl.pallas_call(
        _bpnet_kernel,
        out_shape=jax.ShapeDtypeStruct((B_p, 128), jnp.float32),
        grid=(B_p // tile_b,),
        in_specs=[desc_spec(nO_p, FO), desc_spec(nO_p, FO), desc_spec(nO_p, FO),
                  desc_spec(nH_p, FH), desc_spec(nH_p, FH), desc_spec(nH_p, FH),
                  wspec((FO, n2O)), wspec((1, n2O)), wspec((n2O, n3O)),
                  wspec((1, n3O)), wspec((1, n3O)),
                  wspec((FH, n2H)), wspec((1, n2H)), wspec((n2H, n3H)),
                  wspec((1, n3H)), wspec((1, n3H))],
        out_specs=pl.BlockSpec((tile_b, 128), lambda m: (m, 0)),
        compiler_params=pltpu.CompilerParams(
            dimension_semantics=("parallel",),            # megacore sharding
            vmem_limit_bytes=32 * 1024 * 1024),           # headroom for large tile_b
    )(xO, dOO, dHO, xH, dHH, dOH,
      w1O, b1O, w2O, b2O, w3O,
      w1H, b1H, w2H, b2H, w3H)

    return out[:B, 0], out[:B, 1]


def bpnet_reference(params, x_O, x_H, dx_OO, dx_HO, dx_OH, dx_HH):
    """Pure-JAX reference mirroring the PyTorch forward exactly."""
    w1O, b1O, w2O, b2O, w3O = (params[k] for k in ("w1_O", "b1_O", "w2_O", "b2_O", "w3_O"))
    w1H, b1H, w2H, b2H, w3H = (params[k] for k in ("w1_H", "b1_H", "w2_H", "b2_H", "w3_H"))
    z1_O = x_O @ w1O + b1O
    z2_O = jnp.tanh(z1_O) @ w2O + b2O
    z1_H = x_H @ w1H + b1H
    z2_H = jnp.tanh(z1_H) @ w2H + b2H
    ap1_OO = (dx_OO @ w1O) / jnp.cosh(z1_O) ** 2
    ap2_OO = (ap1_OO @ w2O) / jnp.cosh(z2_O) ** 2
    y_OO = ap2_OO @ w3O
    ap1_HO = (dx_HO @ w1O) / jnp.cosh(z1_O) ** 2
    ap2_HO = (ap1_HO @ w2O) / jnp.cosh(z2_O) ** 2
    y_HO = ap2_HO @ w3O
    ap1_HH = (dx_HH @ w1H) / jnp.cosh(z1_H) ** 2
    ap2_HH = (ap1_HH @ w2H) / jnp.cosh(z2_H) ** 2
    y_HH = ap2_HH @ w3H
    ap1_OH = (dx_OH @ w1H) / jnp.cosh(z1_H) ** 2
    ap2_OH = (ap1_OH @ w2H) / jnp.cosh(z2_H) ** 2
    y_OH = ap2_OH @ w3H
    y_O = y_OO.sum(axis=(-1, -2)) + y_OH.sum(axis=(-1, -2))
    y_H = y_HO.sum(axis=(-1, -2)) + y_HH.sum(axis=(-1, -2))
    return y_O, y_H


def init_params(key):
    nO1, nO2, nO3 = 30, 25, 25
    nH1, nH2, nH3 = 24, 25, 25
    ks = jax.random.split(key, 12)
    n = lambda k, shape: (jax.random.normal(k, shape, dtype=jnp.float32) / 1000.0)
    return {
        "w1_O": n(ks[0], (nO1, nO2)), "b1_O": n(ks[1], (nO2,)),
        "w2_O": n(ks[2], (nO2, nO3)), "b2_O": n(ks[3], (nO3,)),
        "w3_O": n(ks[4], (nO3, 1)),   "b3_O": n(ks[5], (1,)),   # b3 unused in forward
        "w1_H": n(ks[6], (nH1, nH2)), "b1_H": n(ks[7], (nH2,)),
        "w2_H": n(ks[8], (nH2, nH3)), "b2_H": n(ks[9], (nH3,)),
        "w3_H": n(ks[10], (nH3, 1)),  "b3_H": n(ks[11], (1,)),  # b3 unused in forward
    }


if __name__ == "__main__":
    key = jax.random.PRNGKey(0)
    kp, kx = jax.random.split(key)
    params = init_params(kp)

    B, n_O, n_H = 2, 8, 8
    F_O, F_H = 30, 24
    ks = jax.random.split(kx, 6)
    x_O   = jax.random.normal(ks[0], (B, n_O, F_O), dtype=jnp.float32)
    x_H   = jax.random.normal(ks[1], (B, n_H, F_H), dtype=jnp.float32)
    dx_OO = jax.random.normal(ks[2], (B, n_O, F_O), dtype=jnp.float32)
    dx_HO = jax.random.normal(ks[3], (B, n_O, F_O), dtype=jnp.float32)
    dx_OH = jax.random.normal(ks[4], (B, n_H, F_H), dtype=jnp.float32)
    dx_HH = jax.random.normal(ks[5], (B, n_H, F_H), dtype=jnp.float32)

    y_O, y_H = jax.jit(bpnet_forward)(params, x_O, x_H, dx_OO, dx_HO, dx_OH, dx_HH)
    jax.block_until_ready((y_O, y_H))

    ry_O, ry_H = bpnet_reference(params, x_O, x_H, dx_OO, dx_HO, dx_OH, dx_HH)
    np.testing.assert_allclose(np.asarray(y_O), np.asarray(ry_O), rtol=1e-2, atol=1e-8)
    np.testing.assert_allclose(np.asarray(y_H), np.asarray(ry_H), rtol=1e-2, atol=1e-8)

    print("KERNEL_OK")
</pallas_src>

<mosaic_0001>
module attributes {stable_mosaic.version = 11 : i64} {
  func.func @_bpnet_kernel(%arg0: i32, %arg1: memref<64x30xf32, #tpu.memory_space<vmem>>, %arg2: memref<64x30xf32, #tpu.memory_space<vmem>>, %arg3: memref<64x30xf32, #tpu.memory_space<vmem>>, %arg4: memref<64x24xf32, #tpu.memory_space<vmem>>, %arg5: memref<64x24xf32, #tpu.memory_space<vmem>>, %arg6: memref<64x24xf32, #tpu.memory_space<vmem>>, %arg7: memref<30x25xf32, #tpu.memory_space<vmem>>, %arg8: memref<1x25xf32, #tpu.memory_space<vmem>>, %arg9: memref<25x25xf32, #tpu.memory_space<vmem>>, %arg10: memref<1x25xf32, #tpu.memory_space<vmem>>, %arg11: memref<1x25xf32, #tpu.memory_space<vmem>>, %arg12: memref<24x25xf32, #tpu.memory_space<vmem>>, %arg13: memref<1x25xf32, #tpu.memory_space<vmem>>, %arg14: memref<25x25xf32, #tpu.memory_space<vmem>>, %arg15: memref<1x25xf32, #tpu.memory_space<vmem>>, %arg16: memref<1x25xf32, #tpu.memory_space<vmem>>, %arg17: memref<8x128xf32, #tpu.memory_space<vmem>>) attributes {dimension_semantics = [#tpu.dimension_semantics<parallel>], iteration_bounds = array<i64: 1>, scalar_prefetch = 0 : i64, scratch_operands = 0 : i64, tpu.core_type = #tpu.core_type<tc>, window_params = [{transform_indices = @transform_0, window_bounds = array<i64: 64, 30>}, {transform_indices = @transform_1, window_bounds = array<i64: 64, 30>}, {transform_indices = @transform_2, window_bounds = array<i64: 64, 30>}, {transform_indices = @transform_3, window_bounds = array<i64: 64, 24>}, {transform_indices = @transform_4, window_bounds = array<i64: 64, 24>}, {transform_indices = @transform_5, window_bounds = array<i64: 64, 24>}, {pipeline_mode = #tpu.pipeline_mode<synchronous>, transform_indices = @transform_6, window_bounds = array<i64: 30, 25>}, {pipeline_mode = #tpu.pipeline_mode<synchronous>, transform_indices = @transform_7, window_bounds = array<i64: 1, 25>}, {pipeline_mode = #tpu.pipeline_mode<synchronous>, transform_indices = @transform_8, window_bounds = array<i64: 25, 25>}, {pipeline_mode = #tpu.pipeline_mode<synchronous>, transform_indices = @transform_9, window_bounds = array<i64: 1, 25>}, {pipeline_mode = #tpu.pipeline_mode<synchronous>, transform_indices = @transform_10, window_bounds = array<i64: 1, 25>}, {pipeline_mode = #tpu.pipeline_mode<synchronous>, transform_indices = @transform_11, window_bounds = array<i64: 24, 25>}, {pipeline_mode = #tpu.pipeline_mode<synchronous>, transform_indices = @transform_12, window_bounds = array<i64: 1, 25>}, {pipeline_mode = #tpu.pipeline_mode<synchronous>, transform_indices = @transform_13, window_bounds = array<i64: 25, 25>}, {pipeline_mode = #tpu.pipeline_mode<synchronous>, transform_indices = @transform_14, window_bounds = array<i64: 1, 25>}, {pipeline_mode = #tpu.pipeline_mode<synchronous>, transform_indices = @transform_15, window_bounds = array<i64: 1, 25>}, {transform_indices = @transform_16, window_bounds = array<i64: 8, 128>}]} {
    %c0 = arith.constant 0 : index
    %c0_0 = arith.constant 0 : index
    %0 = vector.load %arg1[%c0, %c0_0] : memref<64x30xf32, #tpu.memory_space<vmem>>, vector<64x30xf32>
    %c0_1 = arith.constant 0 : index
    %c0_2 = arith.constant 0 : index
    %1 = vector.load %arg2[%c0_1, %c0_2] : memref<64x30xf32, #tpu.memory_space<vmem>>, vector<64x30xf32>
    %c0_3 = arith.constant 0 : index
    %c0_4 = arith.constant 0 : index
    %2 = vector.load %arg3[%c0_3, %c0_4] : memref<64x30xf32, #tpu.memory_space<vmem>>, vector<64x30xf32>
    %3 = tpu.concatenate %0, %1, %2 in 0 : vector<64x30xf32>, vector<64x30xf32>, vector<64x30xf32> -> vector<192x30xf32>
    %c0_5 = arith.constant 0 : index
    %c0_6 = arith.constant 0 : index
    %4 = vector.load %arg7[%c0_5, %c0_6] : memref<30x25xf32, #tpu.memory_space<vmem>>, vector<30x25xf32>
    %cst = arith.constant dense<0.000000e+00> : vector<192x25xf32>
    %5 = tpu.matmul %3, %4, %cst {dimension_numbers = #tpu.dot_dimension_numbers<[1], [0], [0], [1], [0, 0, 1, 1], [], []>} : vector<192x30xf32>, vector<30x25xf32>, vector<192x25xf32> -> vector<192x25xf32>
    %6 = vector.extract_strided_slice %5 {offsets = [0, 0], sizes = [64, 25], strides = [1, 1]} : vector<192x25xf32> to vector<64x25xf32>
    %c0_7 = arith.constant 0 : index
    %c0_8 = arith.constant 0 : index
    %7 = vector.load %arg8[%c0_7, %c0_8] : memref<1x25xf32, #tpu.memory_space<vmem>>, vector<1x25xf32>
    %8 = vector.broadcast %7 : vector<1x25xf32> to vector<64x25xf32>
    %9 = arith.addf %6, %8 : vector<64x25xf32>
    %10 = math.tanh %9 : vector<64x25xf32>
    %11 = arith.mulf %10, %10 : vector<64x25xf32>
    %cst_9 = arith.constant 1.000000e+00 : f32
    %12 = vector.broadcast %cst_9 : f32 to vector<64x25xf32>
    %13 = arith.subf %12, %11 : vector<64x25xf32>
    %14 = vector.extract_strided_slice %5 {offsets = [64, 0], sizes = [64, 25], strides = [1, 1]} : vector<192x25xf32> to vector<64x25xf32>
    %15 = arith.mulf %14, %13 : vector<64x25xf32>
    %16 = vector.extract_strided_slice %5 {offsets = [128, 0], sizes = [64, 25], strides = [1, 1]} : vector<192x25xf32> to vector<64x25xf32>
    %17 = arith.mulf %16, %13 : vector<64x25xf32>
    %18 = tpu.concatenate %10, %15, %17 in 0 : vector<64x25xf32>, vector<64x25xf32>, vector<64x25xf32> -> vector<192x25xf32>
    %c0_10 = arith.constant 0 : index
    %c0_11 = arith.constant 0 : index
    %19 = vector.load %arg9[%c0_10, %c0_11] : memref<25x25xf32, #tpu.memory_space<vmem>>, vector<25x25xf32>
    %cst_12 = arith.constant dense<0.000000e+00> : vector<192x25xf32>
    %20 = tpu.matmul %18, %19, %cst_12 {dimension_numbers = #tpu.dot_dimension_numbers<[1], [0], [0], [1], [0, 0, 1, 1], [], []>} : vector<192x25xf32>, vector<25x25xf32>, vector<192x25xf32> -> vector<192x25xf32>
    %21 = vector.extract_strided_slice %20 {offsets = [0, 0], sizes = [64, 25], strides = [1, 1]} : vector<192x25xf32> to vector<64x25xf32>
    %c0_13 = arith.constant 0 : index
    %c0_14 = arith.constant 0 : index
    %22 = vector.load %arg10[%c0_13, %c0_14] : memref<1x25xf32, #tpu.memory_space<vmem>>, vector<1x25xf32>
    %23 = vector.broadcast %22 : vector<1x25xf32> to vector<64x25xf32>
    %24 = arith.addf %21, %23 : vector<64x25xf32>
    %25 = math.tanh %24 : vector<64x25xf32>
    %26 = arith.mulf %25, %25 : vector<64x25xf32>
    %cst_15 = arith.constant 1.000000e+00 : f32
    %27 = vector.broadcast %cst_15 : f32 to vector<64x25xf32>
    %28 = arith.subf %27, %26 : vector<64x25xf32>
    %29 = vector.extract_strided_slice %20 {offsets = [64, 0], sizes = [64, 25], strides = [1, 1]} : vector<192x25xf32> to vector<64x25xf32>
    %30 = arith.mulf %29, %28 : vector<64x25xf32>
    %31 = vector.extract_strided_slice %20 {offsets = [128, 0], sizes = [64, 25], strides = [1, 1]} : vector<192x25xf32> to vector<64x25xf32>
    %32 = arith.mulf %31, %28 : vector<64x25xf32>
    %33 = tpu.concatenate %30, %32 in 0 : vector<64x25xf32>, vector<64x25xf32> -> vector<128x25xf32>
    %34 = vector.shape_cast %33 : vector<128x25xf32> to vector<16x8x25xf32>
    %cst_16 = arith.constant dense<0.000000e+00> : vector<16x25xf32>
    %35 = vector.multi_reduction <add>, %34, %cst_16 [1] : vector<16x8x25xf32> to vector<16x25xf32>
    %36 = vector.extract_strided_slice %35 {offsets = [0, 0], sizes = [8, 25], strides = [1, 1]} : vector<16x25xf32> to vector<8x25xf32>
    %37 = vector.extract_strided_slice %35 {offsets = [8, 0], sizes = [8, 25], strides = [1, 1]} : vector<16x25xf32> to vector<8x25xf32>
    %c0_17 = arith.constant 0 : index
    %c0_18 = arith.constant 0 : index
    %38 = vector.load %arg4[%c0_17, %c0_18] : memref<64x24xf32, #tpu.memory_space<vmem>>, vector<64x24xf32>
    %c0_19 = arith.constant 0 : index
    %c0_20 = arith.constant 0 : index
    %39 = vector.load %arg5[%c0_19, %c0_20] : memref<64x24xf32, #tpu.memory_space<vmem>>, vector<64x24xf32>
    %c0_21 = arith.constant 0 : index
    %c0_22 = arith.constant 0 : index
    %40 = vector.load %arg6[%c0_21, %c0_22] : memref<64x24xf32, #tpu.memory_space<vmem>>, vector<64x24xf32>
    %41 = tpu.concatenate %38, %39, %40 in 0 : vector<64x24xf32>, vector<64x24xf32>, vector<64x24xf32> -> vector<192x24xf32>
    %c0_23 = arith.constant 0 : index
    %c0_24 = arith.constant 0 : index
    %42 = vector.load %arg12[%c0_23, %c0_24] : memref<24x25xf32, #tpu.memory_space<vmem>>, vector<24x25xf32>
    %cst_25 = arith.constant dense<0.000000e+00> : vector<192x25xf32>
    %43 = tpu.matmul %41, %42, %cst_25 {dimension_numbers = #tpu.dot_dimension_numbers<[1], [0], [0], [1], [0, 0, 1, 1], [], []>} : vector<192x24xf32>, vector<24x25xf32>, vector<192x25xf32> -> vector<192x25xf32>
    %44 = vector.extract_strided_slice %43 {offsets = [0, 0], sizes = [64, 25], strides = [1, 1]} : vector<192x25xf32> to vector<64x25xf32>
    %c0_26 = arith.constant 0 : index
    %c0_27 = arith.constant 0 : index
    %45 = vector.load %arg13[%c0_26, %c0_27] : memref<1x25xf32, #tpu.memory_space<vmem>>, vector<1x25xf32>
    %46 = vector.broadcast %45 : vector<1x25xf32> to vector<64x25xf32>
    %47 = arith.addf %44, %46 : vector<64x25xf32>
    %48 = math.tanh %47 : vector<64x25xf32>
    %49 = arith.mulf %48, %48 : vector<64x25xf32>
    %cst_28 = arith.constant 1.000000e+00 : f32
    %50 = vector.broadcast %cst_28 : f32 to vector<64x25xf32>
    %51 = arith.subf %50, %49 : vector<64x25xf32>
    %52 = vector.extract_strided_slice %43 {offsets = [64, 0], sizes = [64, 25], strides = [1, 1]} : vector<192x25xf32> to vector<64x25xf32>
    %53 = arith.mulf %52, %51 : vector<64x25xf32>
    %54 = vector.extract_strided_slice %43 {offsets = [128, 0], sizes = [64, 25], strides = [1, 1]} : vector<192x25xf32> to vector<64x25xf32>
    %55 = arith.mulf %54, %51 : vector<64x25xf32>
    %56 = tpu.concatenate %48, %53, %55 in 0 : vector<64x25xf32>, vector<64x25xf32>, vector<64x25xf32> -> vector<192x25xf32>
    %c0_29 = arith.constant 0 : index
    %c0_30 = arith.constant 0 : index
    %57 = vector.load %arg14[%c0_29, %c0_30] : memref<25x25xf32, #tpu.memory_space<vmem>>, vector<25x25xf32>
    %cst_31 = arith.constant dense<0.000000e+00> : vector<192x25xf32>
    %58 = tpu.matmul %56, %57, %cst_31 {dimension_numbers = #tpu.dot_dimension_numbers<[1], [0], [0], [1], [0, 0, 1, 1], [], []>} : vector<192x25xf32>, vector<25x25xf32>, vector<192x25xf32> -> vector<192x25xf32>
    %59 = vector.extract_strided_slice %58 {offsets = [0, 0], sizes = [64, 25], strides = [1, 1]} : vector<192x25xf32> to vector<64x25xf32>
    %c0_32 = arith.constant 0 : index
    %c0_33 = arith.constant 0 : index
    %60 = vector.load %arg15[%c0_32, %c0_33] : memref<1x25xf32, #tpu.memory_space<vmem>>, vector<1x25xf32>
    %61 = vector.broadcast %60 : vector<1x25xf32> to vector<64x25xf32>
    %62 = arith.addf %59, %61 : vector<64x25xf32>
    %63 = math.tanh %62 : vector<64x25xf32>
    %64 = arith.mulf %63, %63 : vector<64x25xf32>
    %cst_34 = arith.constant 1.000000e+00 : f32
    %65 = vector.broadcast %cst_34 : f32 to vector<64x25xf32>
    %66 = arith.subf %65, %64 : vector<64x25xf32>
    %67 = vector.extract_strided_slice %58 {offsets = [64, 0], sizes = [64, 25], strides = [1, 1]} : vector<192x25xf32> to vector<64x25xf32>
    %68 = arith.mulf %67, %66 : vector<64x25xf32>
    %69 = vector.extract_strided_slice %58 {offsets = [128, 0], sizes = [64, 25], strides = [1, 1]} : vector<192x25xf32> to vector<64x25xf32>
    %70 = arith.mulf %69, %66 : vector<64x25xf32>
    %71 = tpu.concatenate %68, %70 in 0 : vector<64x25xf32>, vector<64x25xf32> -> vector<128x25xf32>
    %72 = vector.shape_cast %71 : vector<128x25xf32> to vector<16x8x25xf32>
    %cst_35 = arith.constant dense<0.000000e+00> : vector<16x25xf32>
    %73 = vector.multi_reduction <add>, %72, %cst_35 [1] : vector<16x8x25xf32> to vector<16x25xf32>
    %74 = vector.extract_strided_slice %73 {offsets = [0, 0], sizes = [8, 25], strides = [1, 1]} : vector<16x25xf32> to vector<8x25xf32>
    %75 = vector.extract_strided_slice %73 {offsets = [8, 0], sizes = [8, 25], strides = [1, 1]} : vector<16x25xf32> to vector<8x25xf32>
    %c0_36 = arith.constant 0 : index
    %c0_37 = arith.constant 0 : index
    %76 = vector.load %arg11[%c0_36, %c0_37] : memref<1x25xf32, #tpu.memory_space<vmem>>, vector<1x25xf32>
    %77 = vector.broadcast %76 : vector<1x25xf32> to vector<8x25xf32>
    %78 = arith.mulf %36, %77 : vector<8x25xf32>
    %c0_38 = arith.constant 0 : index
    %c0_39 = arith.constant 0 : index
    %79 = vector.load %arg16[%c0_38, %c0_39] : memref<1x25xf32, #tpu.memory_space<vmem>>, vector<1x25xf32>
    %80 = vector.broadcast %79 : vector<1x25xf32> to vector<8x25xf32>
    %81 = arith.mulf %75, %80 : vector<8x25xf32>
    %82 = arith.addf %78, %81 : vector<8x25xf32>
    %c0_40 = arith.constant 0 : index
    %c0_41 = arith.constant 0 : index
    %83 = vector.load %arg11[%c0_40, %c0_41] : memref<1x25xf32, #tpu.memory_space<vmem>>, vector<1x25xf32>
    %84 = vector.broadcast %83 : vector<1x25xf32> to vector<8x25xf32>
    %85 = arith.mulf %37, %84 : vector<8x25xf32>
    %c0_42 = arith.constant 0 : index
    %c0_43 = arith.constant 0 : index
    %86 = vector.load %arg16[%c0_42, %c0_43] : memref<1x25xf32, #tpu.memory_space<vmem>>, vector<1x25xf32>
    %87 = vector.broadcast %86 : vector<1x25xf32> to vector<8x25xf32>
    %88 = arith.mulf %74, %87 : vector<8x25xf32>
    %89 = arith.addf %85, %88 : vector<8x25xf32>
    %90 = tpu.concatenate %82, %89 in 0 : vector<8x25xf32>, vector<8x25xf32> -> vector<16x25xf32>
    %cst_44 = arith.constant dense<0.000000e+00> : vector<16xf32>
    %91 = vector.multi_reduction <add>, %90, %cst_44 [1] : vector<16x25xf32> to vector<16xf32>
    %92 = vector.shape_cast %91 : vector<16xf32> to vector<16x1xf32>
    %93 = vector.extract_strided_slice %92 {offsets = [0, 0], sizes = [8, 1], strides = [1, 1]} : vector<16x1xf32> to vector<8x1xf32>
    %94 = vector.extract_strided_slice %92 {offsets = [8, 0], sizes = [8, 1], strides = [1, 1]} : vector<16x1xf32> to vector<8x1xf32>
    %95 = tpu.iota {dimensions = array<i32: 1>} : vector<8x128xi32>
    %c0_i32 = arith.constant 0 : i32
    %96 = vector.broadcast %c0_i32 : i32 to vector<8x128xi32>
    %97 = arith.cmpi eq, %95, %96 : vector<8x128xi32>
    %c1_i32 = arith.constant 1 : i32
    %98 = vector.broadcast %c1_i32 : i32 to vector<8x128xi32>
    %99 = arith.cmpi eq, %95, %98 : vector<8x128xi32>
    %cst_45 = arith.constant 0.000000e+00 : f32
    %100 = vector.shape_cast %94 : vector<8x1xf32> to vector<8x1xf32>
    %101 = vector.broadcast %100 : vector<8x1xf32> to vector<8x128xf32>
    %102 = vector.broadcast %cst_45 : f32 to vector<8x128xf32>
    %103 = arith.select %99, %101, %102 : vector<8x128xi1>, vector<8x128xf32>
    %104 = vector.shape_cast %93 : vector<8x1xf32> to vector<8x1xf32>
    %105 = vector.broadcast %104 : vector<8x1xf32> to vector<8x128xf32>
    %106 = arith.select %97, %105, %103 : vector<8x128xi1>, vector<8x128xf32>
    %c0_46 = arith.constant 0 : index
    %c0_47 = arith.constant 0 : index
    %107 = vector.load %arg17[%c0_46, %c0_47] : memref<8x128xf32, #tpu.memory_space<vmem>>, vector<8x128xf32>
    tpu.vector_store %arg17[%c0_46, %c0_47], %106 {strides = array<i32>} : memref<8x128xf32, #tpu.memory_space<vmem>>, vector<8x128xf32>,
    return
  }
  func.func @transform_0(%arg0: i32) -> (i32, i32) {
    %c0_i32 = arith.constant 0 : i32
    %c0_i32_0 = arith.constant 0 : i32
    return %arg0, %c0_i32 : i32, i32
  }
  func.func @transform_1(%arg0: i32) -> (i32, i32) {
    %c0_i32 = arith.constant 0 : i32
    %c0_i32_0 = arith.constant 0 : i32
    return %arg0, %c0_i32 : i32, i32
  }
  func.func @transform_2(%arg0: i32) -> (i32, i32) {
    %c0_i32 = arith.constant 0 : i32
    %c0_i32_0 = arith.constant 0 : i32
    return %arg0, %c0_i32 : i32, i32
  }
  func.func @transform_3(%arg0: i32) -> (i32, i32) {
    %c0_i32 = arith.constant 0 : i32
    %c0_i32_0 = arith.constant 0 : i32
    return %arg0, %c0_i32 : i32, i32
  }
  func.func @transform_4(%arg0: i32) -> (i32, i32) {
    %c0_i32 = arith.constant 0 : i32
    %c0_i32_0 = arith.constant 0 : i32
    return %arg0, %c0_i32 : i32, i32
  }
  func.func @transform_5(%arg0: i32) -> (i32, i32) {
    %c0_i32 = arith.constant 0 : i32
    %c0_i32_0 = arith.constant 0 : i32
    return %arg0, %c0_i32 : i32, i32
  }
  func.func @transform_6(%arg0: i32) -> (i32, i32) {
    %c0_i32 = arith.constant 0 : i32
    %c0_i32_0 = arith.constant 0 : i32
    %c0_i32_1 = arith.constant 0 : i32
    return %c0_i32, %c0_i32_0 : i32, i32
  }
  func.func @transform_7(%arg0: i32) -> (i32, i32) {
    %c0_i32 = arith.constant 0 : i32
    %c0_i32_0 = arith.constant 0 : i32
    %c0_i32_1 = arith.constant 0 : i32
    return %c0_i32, %c0_i32_0 : i32, i32
  }
  func.func @transform_8(%arg0: i32) -> (i32, i32) {
    %c0_i32 = arith.constant 0 : i32
    %c0_i32_0 = arith.constant 0 : i32
    %c0_i32_1 = arith.constant 0 : i32
    return %c0_i32, %c0_i32_0 : i32, i32
  }
  func.func @transform_9(%arg0: i32) -> (i32, i32) {
    %c0_i32 = arith.constant 0 : i32
    %c0_i32_0 = arith.constant 0 : i32
    %c0_i32_1 = arith.constant 0 : i32
    return %c0_i32, %c0_i32_0 : i32, i32
  }
  func.func @transform_10(%arg0: i32) -> (i32, i32) {
    %c0_i32 = arith.constant 0 : i32
    %c0_i32_0 = arith.constant 0 : i32
    %c0_i32_1 = arith.constant 0 : i32
    return %c0_i32, %c0_i32_0 : i32, i32
  }
  func.func @transform_11(%arg0: i32) -> (i32, i32) {
    %c0_i32 = arith.constant 0 : i32
    %c0_i32_0 = arith.constant 0 : i32
    %c0_i32_1 = arith.constant 0 : i32
    return %c0_i32, %c0_i32_0 : i32, i32
  }
  func.func @transform_12(%arg0: i32) -> (i32, i32) {
    %c0_i32 = arith.constant 0 : i32
    %c0_i32_0 = arith.constant 0 : i32
    %c0_i32_1 = arith.constant 0 : i32
    return %c0_i32, %c0_i32_0 : i32, i32
  }
  func.func @transform_13(%arg0: i32) -> (i32, i32) {
    %c0_i32 = arith.constant 0 : i32
    %c0_i32_0 = arith.constant 0 : i32
    %c0_i32_1 = arith.constant 0 : i32
    return %c0_i32, %c0_i32_0 : i32, i32
  }
  func.func @transform_14(%arg0: i32) -> (i32, i32) {
    %c0_i32 = arith.constant 0 : i32
    %c0_i32_0 = arith.constant 0 : i32
    %c0_i32_1 = arith.constant 0 : i32
    return %c0_i32, %c0_i32_0 : i32, i32
  }
  func.func @transform_15(%arg0: i32) -> (i32, i32) {
    %c0_i32 = arith.constant 0 : i32
    %c0_i32_0 = arith.constant 0 : i32
    %c0_i32_1 = arith.constant 0 : i32
    return %c0_i32, %c0_i32_0 : i32, i32
  }
  func.func @transform_16(%arg0: i32) -> (i32, i32) {
    %c0_i32 = arith.constant 0 : i32
    %c0_i32_0 = arith.constant 0 : i32
    return %arg0, %c0_i32 : i32, i32
  }
}

</mosaic_0001>

<llo_original>
// kernel: bpnet_forward.1
$region0: #{bpnet_forward.1}
  #allocation0 [shape = 'u32[]', space=smem, size = 0x4, offset = 0x4, fixed_abs, tag = 'smem constant byte address 0x4 - core index']
  #allocation1 [shape = 'u32[144,128]{1,0:T(1,128)}', space=vmem, size = 0x12000, scoped, tag = 'internal scratch']
  %s0 = inlined_call_operand.vmem [shape: f32[64,30], index: 0, kind: input, shape index: {}]
  %s1 = inlined_call_operand.vmem [shape: f32[64,30], index: 1, kind: input, shape index: {}]
  %s2 = inlined_call_operand.vmem [shape: f32[64,30], index: 2, kind: input, shape index: {}]
  %s3 = inlined_call_operand.vmem [shape: f32[64,24], index: 3, kind: input, shape index: {}]
  %s4 = inlined_call_operand.vmem [shape: f32[64,24], index: 4, kind: input, shape index: {}]
  %s5 = inlined_call_operand.vmem [shape: f32[64,24], index: 5, kind: input, shape index: {}]
  %s6 = inlined_call_operand.vmem [shape: f32[30,25], index: 6, kind: input, shape index: {}]
  %s7 = inlined_call_operand.vmem [shape: f32[1,25], index: 7, kind: input, shape index: {}]
  %s8 = inlined_call_operand.vmem [shape: f32[25,25], index: 8, kind: input, shape index: {}]
  %s9 = inlined_call_operand.vmem [shape: f32[1,25], index: 9, kind: input, shape index: {}]
  %s10 = inlined_call_operand.vmem [shape: f32[1,25], index: 10, kind: input, shape index: {}]
  %s11 = inlined_call_operand.vmem [shape: f32[24,25], index: 11, kind: input, shape index: {}]
  %s12 = inlined_call_operand.vmem [shape: f32[1,25], index: 12, kind: input, shape index: {}]
  %s13 = inlined_call_operand.vmem [shape: f32[25,25], index: 13, kind: input, shape index: {}]
  %s14 = inlined_call_operand.vmem [shape: f32[1,25], index: 14, kind: input, shape index: {}]
  %s15 = inlined_call_operand.vmem [shape: f32[1,25], index: 15, kind: input, shape index: {}]
  %s16 = inlined_call_operand.vmem [shape: f32[8,128], index: 16, kind: output, shape index: {}]
  %s17 = sld [smem:[#allocation0]]
  $region74: #{bpnet_forward.1} parent=0
    _
  %s19 = ssub.s32 1, %s17
  %s20 = scalar_select 0, %s19, %s17
  // Predicated region
  $region2: #{bpnet_forward.1} parent=0 // pred_check
    _
  $region3: #{bpnet_forward.1} parent=0 // pred_check_branch
    %22 = sbr.rel (0) target = $region5
  $region4: #{bpnet_forward.1} parent=0 // pred_region
    _
  $region5: #{bpnet_forward.1} parent=0 // pred_fallthru
    _
  // Predicated region
  $region6: #{bpnet_forward.1} parent=0 // pred_check
    _
  $region7: #{bpnet_forward.1} parent=0 // pred_check_branch
    %24 = sbr.rel (0) target = $region9
  $region8: #{bpnet_forward.1} parent=0 // pred_region
    _
  $region9: #{bpnet_forward.1} parent=0 // pred_fallthru
    _
  // Predicated region
  $region10: #{bpnet_forward.1} parent=0 // pred_check
    _
  $region11: #{bpnet_forward.1} parent=0 // pred_check_branch
    %26 = sbr.rel (0) target = $region13
  $region12: #{bpnet_forward.1} parent=0 // pred_region
    _
  $region13: #{bpnet_forward.1} parent=0 // pred_fallthru
    _
  // Predicated region
  $region14: #{bpnet_forward.1} parent=0 // pred_check
    _
  $region15: #{bpnet_forward.1} parent=0 // pred_check_branch
    %28 = sbr.rel (0) target = $region17
  $region16: #{bpnet_forward.1} parent=0 // pred_region
    _
  $region17: #{bpnet_forward.1} parent=0 // pred_fallthru
    _
  // Predicated region
  $region18: #{bpnet_forward.1} parent=0 // pred_check
    _
  $region19: #{bpnet_forward.1} parent=0 // pred_check_branch
    %30 = sbr.rel (0) target = $region21
  $region20: #{bpnet_forward.1} parent=0 // pred_region
    _
  $region21: #{bpnet_forward.1} parent=0 // pred_fallthru
    _
  // Predicated region
  $region22: #{bpnet_forward.1} parent=0 // pred_check
    _
  $region23: #{bpnet_forward.1} parent=0 // pred_check_branch
    %32 = sbr.rel (0) target = $region25
  $region24: #{bpnet_forward.1} parent=0 // pred_region
    _
  $region25: #{bpnet_forward.1} parent=0 // pred_fallthru
    _
  // Predicated region
  $region26: #{bpnet_forward.1} parent=0 // pred_check
    _
  $region27: #{bpnet_forward.1} parent=0 // pred_check_branch
    %34 = sbr.rel (0) target = $region29
  $region28: #{bpnet_forward.1} parent=0 // pred_region
    _
  $region29: #{bpnet_forward.1} parent=0 // pred_fallthru
    _
  // Predicated region
  $region30: #{bpnet_forward.1} parent=0 // pred_check
    _
  $region31: #{bpnet_forward.1} parent=0 // pred_check_branch
    %36 = sbr.rel (0) target = $region33
  $region32: #{bpnet_forward.1} parent=0 // pred_region
    _
  $region33: #{bpnet_forward.1} parent=0 // pred_fallthru
    _
  // Predicated region
  $region34: #{bpnet_forward.1} parent=0 // pred_check
    _
  $region35: #{bpnet_forward.1} parent=0 // pred_check_branch
    %38 = sbr.rel (0) target = $region37
  $region36: #{bpnet_forward.1} parent=0 // pred_region
    _
  $region37: #{bpnet_forward.1} parent=0 // pred_fallthru
    _
  // Predicated region
  $region38: #{bpnet_forward.1} parent=0 // pred_check
    _
  $region39: #{bpnet_forward.1} parent=0 // pred_check_branch
    %40 = sbr.rel (0) target = $region41
  $region40: #{bpnet_forward.1} parent=0 // pred_region
    _
  $region41: #{bpnet_forward.1} parent=0 // pred_fallthru
    _
  // Predicated region
  $region42: #{bpnet_forward.1} parent=0 // pred_check
    _
  $region43: #{bpnet_forward.1} parent=0 // pred_check_branch
    %42 = sbr.rel (0) target = $region45
  $region44: #{bpnet_forward.1} parent=0 // pred_region
    _
  $region45: #{bpnet_forward.1} parent=0 // pred_fallthru
    _
  // Predicated region
  $region46: #{bpnet_forward.1} parent=0 // pred_check
    _
  $region47: #{bpnet_forward.1} parent=0 // pred_check_branch
    %44 = sbr.rel (0) target = $region49
  $region48: #{bpnet_forward.1} parent=0 // pred_region
    _
  $region49: #{bpnet_forward.1} parent=0 // pred_fallthru
    _
  // Predicated region
  $region50: #{bpnet_forward.1} parent=0 // pred_check
    _
  $region51: #{bpnet_forward.1} parent=0 // pred_check_branch
    %46 = sbr.rel (0) target = $region53
  $region52: #{bpnet_forward.1} parent=0 // pred_region
    _
  $region53: #{bpnet_forward.1} parent=0 // pred_fallthru
    _
  // Predicated region
  $region54: #{bpnet_forward.1} parent=0 // pred_check
    _
  $region55: #{bpnet_forward.1} parent=0 // pred_check_branch
    %48 = sbr.rel (0) target = $region57
  $region56: #{bpnet_forward.1} parent=0 // pred_region
    _
  $region57: #{bpnet_forward.1} parent=0 // pred_fallthru
    _
  // Predicated region
  $region58: #{bpnet_forward.1} parent=0 // pred_check
    _
  $region59: #{bpnet_forward.1} parent=0 // pred_check_branch
    %50 = sbr.rel (0) target = $region61
  $region60: #{bpnet_forward.1} parent=0 // pred_region
    _
  $region61: #{bpnet_forward.1} parent=0 // pred_fallthru
    _
  // Predicated region
  $region62: #{bpnet_forward.1} parent=0 // pred_check
    _
  $region63: #{bpnet_forward.1} parent=0 // pred_check_branch
    %52 = sbr.rel (0) target = $region65
  $region64: #{bpnet_forward.1} parent=0 // pred_region
    _
  $region65: #{bpnet_forward.1} parent=0 // pred_fallthru
    _
  %v53 = vld [vmem:[%s0] sm:$0xff]
  %v54 = vld [vmem:[%s0 + $0x8] sm:$0xff]
  %v55 = vld [vmem:[%s0 + $0x10] sm:$0xff]
  %v56 = vld [vmem:[%s0 + $0x18] sm:$0xff]
  %v57 = vld [vmem:[%s0 + $0x20] sm:$0xff]
  %v58 = vld [vmem:[%s0 + $0x28] sm:$0xff]
  %v59 = vld [vmem:[%s0 + $0x30] sm:$0xff]
  %v60 = vld [vmem:[%s0 + $0x38] sm:$0xff]
  %v61 = vld [vmem:[%s1] sm:$0xff]
  %v62 = vld [vmem:[%s1 + $0x8] sm:$0xff]
  %v63 = vld [vmem:[%s1 + $0x10] sm:$0xff]
  %v64 = vld [vmem:[%s1 + $0x18] sm:$0xff]
  %v65 = vld [vmem:[%s1 + $0x20] sm:$0xff]
  %v66 = vld [vmem:[%s1 + $0x28] sm:$0xff]
  %v67 = vld [vmem:[%s1 + $0x30] sm:$0xff]
  %v68 = vld [vmem:[%s1 + $0x38] sm:$0xff]
  %v69 = vld [vmem:[%s2] sm:$0xff]
  %v70 = vld [vmem:[%s2 + $0x8] sm:$0xff]
  %v71 = vld [vmem:[%s2 + $0x10] sm:$0xff]
  %v72 = vld [vmem:[%s2 + $0x18] sm:$0xff]
  %v73 = vld [vmem:[%s2 + $0x20] sm:$0xff]
  %v74 = vld [vmem:[%s2 + $0x28] sm:$0xff]
  %v75 = vld [vmem:[%s2 + $0x30] sm:$0xff]
  %v76 = vld [vmem:[%s2 + $0x38] sm:$0xff]
  %v77 = vld [vmem:[%s6] sm:$0xff]
  %v78 = vld [vmem:[%s6 + $0x8] sm:$0xff]
  %v79 = vld [vmem:[%s6 + $0x10] sm:$0xff]
  %v80 = vld [vmem:[%s6 + $0x18] sm:$0x3f]
  %vm81 = vcmask 244736
  %v83 = vsel %vm81, %v53, 0
  %v86 = vsel %vm81, %v54, 0
  %v89 = vsel %vm81, %v55, 0
  %v92 = vsel %vm81, %v56, 0
  %v95 = vsel %vm81, %v57, 0
  %v98 = vsel %vm81, %v58, 0
  %v101 = vsel %vm81, %v59, 0
  %v104 = vsel %vm81, %v60, 0
  %v107 = vsel %vm81, %v61, 0
  %v110 = vsel %vm81, %v62, 0
  %v113 = vsel %vm81, %v63, 0
  %v116 = vsel %vm81, %v64, 0
  %v119 = vsel %vm81, %v65, 0
  %v122 = vsel %vm81, %v66, 0
  %v125 = vsel %vm81, %v67, 0
  %v128 = vsel %vm81, %v68, 0
  %v131 = vsel %vm81, %v69, 0
  %v134 = vsel %vm81, %v70, 0
  %v137 = vsel %vm81, %v71, 0
  %v140 = vsel %vm81, %v72, 0
  %v143 = vsel %vm81, %v73, 0
  %v146 = vsel %vm81, %v74, 0
  %v149 = vsel %vm81, %v75, 0
  %v152 = vsel %vm81, %v76, 0
  %vm154 = vcmask 1045504
  %v156 = vsel %vm154, %v80, 0
  %158 = vmatprep.subr.mxu0 0.0
  %159 = vmatpush1.msra.mxu0 0.0
  %160 = vmatprep.subr.mxu0 0.0
  %161 = vmatpush1.msra.mxu0 0.0
  %162 = vmatprep.subr.mxu0 0.0
  %163 = vmatpush1.msra.mxu0 0.0
  %164 = vmatprep.subr.mxu0 0.0
  %165 = vmatpush1.msra.mxu0 0.0
  %166 = vmatprep.subr.mxu0 0.0
  %167 = vmatpush1.msra.mxu0 0.0
  %168 = vmatprep.subr.mxu0 0.0
  %169 = vmatpush1.msra.mxu0 0.0
  %170 = vmatprep.subr.mxu0 0.0
  %171 = vmatpush1.msra.mxu0 0.0
  %172 = vmatprep.subr.mxu0 0.0
  %173 = vmatpush1.msra.mxu0 0.0
  %174 = vmatprep.subr.mxu0 0.0
  %175 = vmatpush1.msra.mxu0 0.0
  %176 = vmatprep.subr.mxu0 0.0
  %177 = vmatpush1.msra.mxu0 0.0
  %178 = vmatprep.subr.mxu0 0.0
  %179 = vmatpush1.msra.mxu0 0.0
  %180 = vmatprep.subr.mxu0 0.0
  %181 = vmatpush1.msra.mxu0 0.0
  %182 = vmatprep.subr.mxu0 0.0
  %183 = vmatpush1.msra.mxu0 %v156
  %184 = vmatprep.subr.mxu0 0.0
  %185 = vmatpush1.msra.mxu0 %v79
  %186 = vmatprep.subr.mxu0 0.0
  %187 = vmatpush1.msra.mxu0 %v78
  %188 = vmatprep.subr.mxu0 0.0
  %189 = vmatpush1.msra.mxu0 %v77
  %190 = vmatprep.subr.mxu0 0.0
  %191 = vmatpush2.msra.mxu0 0.0
  %192 = vmatprep.subr.mxu0 0.0
  %193 = vmatpush2.msra.mxu0 0.0
  %194 = vmatprep.subr.mxu0 0.0
  %195 = vmatpush2.msra.mxu0 0.0
  %196 = vmatprep.subr.mxu0 0.0
  %197 = vmatpush2.msra.mxu0 0.0
  %198 = vmatprep.subr.mxu0 0.0
  %199 = vmatpush2.msra.mxu0 0.0
  %200 = vmatprep.subr.mxu0 0.0
  %201 = vmatpush2.msra.mxu0 0.0
  %202 = vmatprep.subr.mxu0 0.0
  %203 = vmatpush2.msra.mxu0 0.0
  %204 = vmatprep.subr.mxu0 0.0
  %205 = vmatpush2.msra.mxu0 0.0
  %206 = vmatprep.subr.mxu0 0.0
  %207 = vmatpush2.msra.mxu0 0.0
  %208 = vmatprep.subr.mxu0 0.0
  %209 = vmatpush2.msra.mxu0 0.0
  %210 = vmatprep.subr.mxu0 0.0
  %211 = vmatpush2.msra.mxu0 0.0
  %212 = vmatprep.subr.mxu0 0.0
  %213 = vmatpush2.msra.mxu0 0.0
  %214 = vmatprep.subr.mxu0 0.0
  %215 = vmatpush2.msra.mxu0 0.0
  %216 = vmatprep.subr.mxu0 0.0
  %217 = vmatpush2.msra.mxu0 0.0
  %218 = vmatprep.subr.mxu0 0.0
  %219 = vmatpush2.msra.mxu0 0.0
  %220 = vmatprep.subr.mxu0 0.0
  %221 = vmatpush2.msra.mxu0 0.0
  %222 = vmatprep.mubr.f32.mxu0 0.0
  %223 = vmatmul.mubr.f32.gmra.mxu0 %v83
  %v224 = vpop.f32.mrf.mxu0
  %v225 = vadd.f32 0.0, %v224
  %v226 = vpop.f32.mrf.mxu0
  %227 = vmatprep.mubr.f32.mxu0 0.0
  %228 = vmatmul.mubr.f32.gmra.mxu0 %v86
  %v229 = vpop.f32.mrf.mxu0
  %v230 = vadd.f32 0.0, %v229
  %v231 = vpop.f32.mrf.mxu0
  %232 = vmatprep.mubr.f32.mxu0 0.0
  %233 = vmatmul.mubr.f32.gmra.mxu0 %v89
  %v234 = vpop.f32.mrf.mxu0
  %v235 = vadd.f32 0.0, %v234
  %v236 = vpop.f32.mrf.mxu0
  %237 = vmatprep.mubr.f32.mxu0 0.0
  %238 = vmatmul.mubr.f32.gmra.mxu0 %v92
  %v239 = vpop.f32.mrf.mxu0
  %v240 = vadd.f32 0.0, %v239
  %v241 = vpop.f32.mrf.mxu0
  %242 = vmatprep.mubr.f32.mxu0 0.0
  %243 = vmatmul.mubr.f32.gmra.mxu0 %v95
  %v244 = vpop.f32.mrf.mxu0
  %v245 = vadd.f32 0.0, %v244
  %v246 = vpop.f32.mrf.mxu0
  %247 = vmatprep.mubr.f32.mxu0 0.0
  %248 = vmatmul.mubr.f32.gmra.mxu0 %v98
  %v249 = vpop.f32.mrf.mxu0
  %v250 = vadd.f32 0.0, %v249
  %v251 = vpop.f32.mrf.mxu0
  %252 = vmatprep.mubr.f32.mxu0 0.0
  %253 = vmatmul.mubr.f32.gmra.mxu0 %v101
  %v254 = vpop.f32.mrf.mxu0
  %v255 = vadd.f32 0.0, %v254
  %v256 = vpop.f32.mrf.mxu0
  %257 = vmatprep.mubr.f32.mxu0 0.0
  %258 = vmatmul.mubr.f32.gmra.mxu0 %v104
  %v259 = vpop.f32.mrf.mxu0
  %v260 = vadd.f32 0.0, %v259
  %v261 = vpop.f32.mrf.mxu0
  %262 = vmatprep.mubr.f32.mxu0 0.0
  %263 = vmatmul.mubr.f32.gmra.mxu0 %v107
  %v264 = vpop.f32.mrf.mxu0
  %v265 = vadd.f32 0.0, %v264
  %v266 = vpop.f32.mrf.mxu0
  %267 = vmatprep.mubr.f32.mxu0 0.0
  %268 = vmatmul.mubr.f32.gmra.mxu0 %v110
  %v269 = vpop.f32.mrf.mxu0
  %v270 = vadd.f32 0.0, %v269
  %v271 = vpop.f32.mrf.mxu0
  %272 = vmatprep.mubr.f32.mxu0 0.0
  %273 = vmatmul.mubr.f32.gmra.mxu0 %v113
  %v274 = vpop.f32.mrf.mxu0
  %v275 = vadd.f32 0.0, %v274
  %v276 = vpop.f32.mrf.mxu0
  %277 = vmatprep.mubr.f32.mxu0 0.0
  %278 = vmatmul.mubr.f32.gmra.mxu0 %v116
  %v279 = vpop.f32.mrf.mxu0
  %v280 = vadd.f32 0.0, %v279
  %v281 = vpop.f32.mrf.mxu0
  %282 = vmatprep.mubr.f32.mxu0 0.0
  %283 = vmatmul.mubr.f32.gmra.mxu0 %v119
  %v284 = vpop.f32.mrf.mxu0
  %v285 = vadd.f32 0.0, %v284
  %v286 = vpop.f32.mrf.mxu0
  %287 = vmatprep.mubr.f32.mxu0 0.0
  %288 = vmatmul.mubr.f32.gmra.mxu0 %v122
  %v289 = vpop.f32.mrf.mxu0
  %v290 = vadd.f32 0.0, %v289
  %v291 = vpop.f32.mrf.mxu0
  %292 = vmatprep.mubr.f32.mxu0 0.0
  %293 = vmatmul.mubr.f32.gmra.mxu0 %v125
  %v294 = vpop.f32.mrf.mxu0
  %v295 = vadd.f32 0.0, %v294
  %v296 = vpop.f32.mrf.mxu0
  %297 = vmatprep.mubr.f32.mxu0 0.0
  %298 = vmatmul.mubr.f32.gmra.mxu0 %v128
  %v299 = vpop.f32.mrf.mxu0
  %v300 = vadd.f32 0.0, %v299
  %v301 = vpop.f32.mrf.mxu0
  %302 = vmatprep.mubr.f32.mxu0 0.0
  %303 = vmatmul.mubr.f32.gmra.mxu0 %v131
  %v304 = vpop.f32.mrf.mxu0
  %v305 = vadd.f32 0.0, %v304
  %v306 = vpop.f32.mrf.mxu0
  %307 = vmatprep.mubr.f32.mxu0 0.0
  %308 = vmatmul.mubr.f32.gmra.mxu0 %v134
  %v309 = vpop.f32.mrf.mxu0
  %v310 = vadd.f32 0.0, %v309
  %v311 = vpop.f32.mrf.mxu0
  %312 = vmatprep.mubr.f32.mxu0 0.0
  %313 = vmatmul.mubr.f32.gmra.mxu0 %v137
  %v314 = vpop.f32.mrf.mxu0
  %v315 = vadd.f32 0.0, %v314
  %v316 = vpop.f32.mrf.mxu0
  %317 = vmatprep.mubr.f32.mxu0 0.0
  %318 = vmatmul.mubr.f32.gmra.mxu0 %v140
  %v319 = vpop.f32.mrf.mxu0
  %v320 = vadd.f32 0.0, %v319
  %v321 = vpop.f32.mrf.mxu0
  %322 = vmatprep.mubr.f32.mxu0 0.0
  %323 = vmatmul.mubr.f32.gmra.mxu0 %v143
  %v324 = vpop.f32.mrf.mxu0
  %v325 = vadd.f32 0.0, %v324
  %v326 = vpop.f32.mrf.mxu0
  %327 = vmatprep.mubr.f32.mxu0 0.0
  %328 = vmatmul.mubr.f32.gmra.mxu0 %v146
  %v329 = vpop.f32.mrf.mxu0
  %v330 = vadd.f32 0.0, %v329
  %v331 = vpop.f32.mrf.mxu0
  %332 = vmatprep.mubr.f32.mxu0 0.0
  %333 = vmatmul.mubr.f32.gmra.mxu0 %v149
  %v334 = vpop.f32.mrf.mxu0
  %v335 = vadd.f32 0.0, %v334
  %v336 = vpop.f32.mrf.mxu0
  %337 = vmatprep.mubr.f32.mxu0 0.0
  %338 = vmatmul.mubr.f32.gmra.mxu0 %v152
  %v339 = vpop.f32.mrf.mxu0
  %v340 = vadd.f32 0.0, %v339
  %v341 = vpop.f32.mrf.mxu0
  %342 = vdwg.mxu0
  %v343 = vld [vmem:[%s7] sm:$0x1]
  %v345 = vlaneseq
  %v346 = vshrl.u32 %v345, 7
  %v347 = vsub.s32 0, %v346
  %v348 = vrot.slane %v343, %v347
  %v350 = vadd.f32 %v225, %v348
  %v351 = vadd.f32 %v230, %v348
  %v352 = vadd.f32 %v235, %v348
  %v353 = vadd.f32 %v240, %v348
  %v354 = vadd.f32 %v245, %v348
  %v355 = vadd.f32 %v250, %v348
  %v356 = vadd.f32 %v255, %v348
  %v357 = vadd.f32 %v260, %v348
  %v358 = vtanh.pop %v350
  %v359 = vtanh.pop %v351
  %v360 = vtanh.pop %v352
  %v361 = vtanh.pop %v353
  %v362 = vtanh.pop %v354
  %v363 = vtanh.pop %v355
  %v364 = vtanh.pop %v356
  %v365 = vtanh.pop %v357
  %v366 = vmul.f32 %v358, %v358
  %v367 = vmul.f32 %v359, %v359
  %v368 = vmul.f32 %v360, %v360
  %v369 = vmul.f32 %v361, %v361
  %v370 = vmul.f32 %v362, %v362
  %v371 = vmul.f32 %v363, %v363
  %v372 = vmul.f32 %v364, %v364
  %v373 = vmul.f32 %v365, %v365
  %v374 = vsub.f32 1.0, %v366
  %v375 = vsub.f32 1.0, %v367
  %v376 = vsub.f32 1.0, %v368
  %v377 = vsub.f32 1.0, %v369
  %v378 = vsub.f32 1.0, %v370
  %v379 = vsub.f32 1.0, %v371
  %v380 = vsub.f32 1.0, %v372
  %v381 = vsub.f32 1.0, %v373
  %v382 = vmul.f32 %v265, %v374
  %v383 = vmul.f32 %v270, %v375
  %v384 = vmul.f32 %v275, %v376
  %v385 = vmul.f32 %v280, %v377
  %v386 = vmul.f32 %v285, %v378
  %v387 = vmul.f32 %v290, %v379
  %v388 = vmul.f32 %v295, %v380
  %v389 = vmul.f32 %v300, %v381
  %v390 = vmul.f32 %v305, %v374
  %v391 = vmul.f32 %v310, %v375
  %v392 = vmul.f32 %v315, %v376
  %v393 = vmul.f32 %v320, %v377
  %v394 = vmul.f32 %v325, %v378
  %v395 = vmul.f32 %v330, %v379
  %v396 = vmul.f32 %v335, %v380
  %v397 = vmul.f32 %v340, %v381
  %v398 = vld [vmem:[%s8] sm:$0xff]
  %v399 = vld [vmem:[%s8 + $0x8] sm:$0xff]
  %v400 = vld [vmem:[%s8 + $0x10] sm:$0xff]
  %v401 = vld [vmem:[%s8 + $0x18] sm:$0x1]
  %vm402 = vcmask 203776
  %v404 = vsel %vm402, %v358, 0
  %v407 = vsel %vm402, %v359, 0
  %v410 = vsel %vm402, %v360, 0
  %v413 = vsel %vm402, %v361, 0
  %v416 = vsel %vm402, %v362, 0
  %v419 = vsel %vm402, %v363, 0
  %v422 = vsel %vm402, %v364, 0
  %v425 = vsel %vm402, %v365, 0
  %v428 = vsel %vm402, %v382, 0
  %v431 = vsel %vm402, %v383, 0
  %v434 = vsel %vm402, %v384, 0
  %v437 = vsel %vm402, %v385, 0
  %v440 = vsel %vm402, %v386, 0
  %v443 = vsel %vm402, %v387, 0
  %v446 = vsel %vm402, %v388, 0
  %v449 = vsel %vm402, %v389, 0
  %v452 = vsel %vm402, %v390, 0
  %v455 = vsel %vm402, %v391, 0
  %v458 = vsel %vm402, %v392, 0
  %v461 = vsel %vm402, %v393, 0
  %v464 = vsel %vm402, %v394, 0
  %v467 = vsel %vm402, %v395, 0
  %v470 = vsel %vm402, %v396, 0
  %v473 = vsel %vm402, %v397, 0
  %vm475 = vcmask 1040384
  %v477 = vsel %vm475, %v401, 0
  %479 = vmatprep.subr.mxu0 0.0
  %480 = vmatpush1.msra.mxu0 0.0
  %481 = vmatprep.subr.mxu0 0.0
  %482 = vmatpush1.msra.mxu0 0.0
  %483 = vmatprep.subr.mxu0 0.0
  %484 = vmatpush1.msra.mxu0 0.0
  %485 = vmatprep.subr.mxu0 0.0
  %486 = vmatpush1.msra.mxu0 0.0
  %487 = vmatprep.subr.mxu0 0.0
  %488 = vmatpush1.msra.mxu0 0.0
  %489 = vmatprep.subr.mxu0 0.0
  %490 = vmatpush1.msra.mxu0 0.0
  %491 = vmatprep.subr.mxu0 0.0
  %492 = vmatpush1.msra.mxu0 0.0
  %493 = vmatprep.subr.mxu0 0.0
  %494 = vmatpush1.msra.mxu0 0.0
  %495 = vmatprep.subr.mxu0 0.0
  %496 = vmatpush1.msra.mxu0 0.0
  %497 = vmatprep.subr.mxu0 0.0
  %498 = vmatpush1.msra.mxu0 0.0
  %499 = vmatprep.subr.mxu0 0.0
  %500 = vmatpush1.msra.mxu0 0.0
  %501 = vmatprep.subr.mxu0 0.0
  %502 = vmatpush1.msra.mxu0 0.0
  %503 = vmatprep.subr.mxu0 0.0
  %504 = vmatpush1.msra.mxu0 %v477
  %505 = vmatprep.subr.mxu0 0.0
  %506 = vmatpush1.msra.mxu0 %v400
  %507 = vmatprep.subr.mxu0 0.0
  %508 = vmatpush1.msra.mxu0 %v399
  %509 = vmatprep.subr.mxu0 0.0
  %510 = vmatpush1.msra.mxu0 %v398
  %511 = vmatprep.subr.mxu0 0.0
  %512 = vmatpush2.msra.mxu0 0.0
  %513 = vmatprep.subr.mxu0 0.0
  %514 = vmatpush2.msra.mxu0 0.0
  %515 = vmatprep.subr.mxu0 0.0
  %516 = vmatpush2.msra.mxu0 0.0
  %517 = vmatprep.subr.mxu0 0.0
  %518 = vmatpush2.msra.mxu0 0.0
  %519 = vmatprep.subr.mxu0 0.0
  %520 = vmatpush2.msra.mxu0 0.0
  %521 = vmatprep.subr.mxu0 0.0
  %522 = vmatpush2.msra.mxu0 0.0
  %523 = vmatprep.subr.mxu0 0.0
  %524 = vmatpush2.msra.mxu0 0.0
  %525 = vmatprep.subr.mxu0 0.0
  %526 = vmatpush2.msra.mxu0 0.0
  %527 = vmatprep.subr.mxu0 0.0
  %528 = vmatpush2.msra.mxu0 0.0
  %529 = vmatprep.subr.mxu0 0.0
  %530 = vmatpush2.msra.mxu0 0.0
  %531 = vmatprep.subr.mxu0 0.0
  %532 = vmatpush2.msra.mxu0 0.0
  %533 = vmatprep.subr.mxu0 0.0
  %534 = vmatpush2.msra.mxu0 0.0
  %535 = vmatprep.subr.mxu0 0.0
  %536 = vmatpush2.msra.mxu0 0.0
  %537 = vmatprep.subr.mxu0 0.0
  %538 = vmatpush2.msra.mxu0 0.0
  %539 = vmatprep.subr.mxu0 0.0
  %540 = vmatpush2.msra.mxu0 0.0
  %541 = vmatprep.subr.mxu0 0.0
  %542 = vmatpush2.msra.mxu0 0.0
  %543 = vmatprep.mubr.f32.mxu0 0.0
  %544 = vmatmul.mubr.f32.gmra.mxu0 %v404
  %v545 = vpop.f32.mrf.mxu0
  %v546 = vadd.f32 0.0, %v545
  %v547 = vpop.f32.mrf.mxu0
  %548 = vmatprep.mubr.f32.mxu0 0.0
  %549 = vmatmul.mubr.f32.gmra.mxu0 %v407
  %v550 = vpop.f32.mrf.mxu0
  %v551 = vadd.f32 0.0, %v550
  %v552 = vpop.f32.mrf.mxu0
  %553 = vmatprep.mubr.f32.mxu0 0.0
  %554 = vmatmul.mubr.f32.gmra.mxu0 %v410
  %v555 = vpop.f32.mrf.mxu0
  %v556 = vadd.f32 0.0, %v555
  %v557 = vpop.f32.mrf.mxu0
  %558 = vmatprep.mubr.f32.mxu0 0.0
  %559 = vmatmul.mubr.f32.gmra.mxu0 %v413
  %v560 = vpop.f32.mrf.mxu0
  %v561 = vadd.f32 0.0, %v560
  %v562 = vpop.f32.mrf.mxu0
  %563 = vmatprep.mubr.f32.mxu0 0.0
  %564 = vmatmul.mubr.f32.gmra.mxu0 %v416
  %v565 = vpop.f32.mrf.mxu0
  %v566 = vadd.f32 0.0, %v565
  %v567 = vpop.f32.mrf.mxu0
  %568 = vmatprep.mubr.f32.mxu0 0.0
  %569 = vmatmul.mubr.f32.gmra.mxu0 %v419
  %v570 = vpop.f32.mrf.mxu0
  %v571 = vadd.f32 0.0, %v570
  %v572 = vpop.f32.mrf.mxu0
  %573 = vmatprep.mubr.f32.mxu0 0.0
  %574 = vmatmul.mubr.f32.gmra.mxu0 %v422
  %v575 = vpop.f32.mrf.mxu0
  %v576 = vadd.f32 0.0, %v575
  %v577 = vpop.f32.mrf.mxu0
  %578 = vmatprep.mubr.f32.mxu0 0.0
  %579 = vmatmul.mubr.f32.gmra.mxu0 %v425
  %v580 = vpop.f32.mrf.mxu0
  %v581 = vadd.f32 0.0, %v580
  %v582 = vpop.f32.mrf.mxu0
  %583 = vmatprep.mubr.f32.mxu0 0.0
  %584 = vmatmul.mubr.f32.gmra.mxu0 %v428
  %v585 = vpop.f32.mrf.mxu0
  %v586 = vadd.f32 0.0, %v585
  %v587 = vpop.f32.mrf.mxu0
  %588 = vmatprep.mubr.f32.mxu0 0.0
  %589 = vmatmul.mubr.f32.gmra.mxu0 %v431
  %v590 = vpop.f32.mrf.mxu0
  %v591 = vadd.f32 0.0, %v590
  %v592 = vpop.f32.mrf.mxu0
  %593 = vmatprep.mubr.f32.mxu0 0.0
  %594 = vmatmul.mubr.f32.gmra.mxu0 %v434
  %v595 = vpop.f32.mrf.mxu0
  %v596 = vadd.f32 0.0, %v595
  %v597 = vpop.f32.mrf.mxu0
  %598 = vmatprep.mubr.f32.mxu0 0.0
  %599 = vmatmul.mubr.f32.gmra.mxu0 %v437
  %v600 = vpop.f32.mrf.mxu0
  %v601 = vadd.f32 0.0, %v600
  %v602 = vpop.f32.mrf.mxu0
  %603 = vmatprep.mubr.f32.mxu0 0.0
  %604 = vmatmul.mubr.f32.gmra.mxu0 %v440
  %v605 = vpop.f32.mrf.mxu0
  %v606 = vadd.f32 0.0, %v605
  %v607 = vpop.f32.mrf.mxu0
  %608 = vmatprep.mubr.f32.mxu0 0.0
  %609 = vmatmul.mubr.f32.gmra.mxu0 %v443
  %v610 = vpop.f32.mrf.mxu0
  %v611 = vadd.f32 0.0, %v610
  %v612 = vpop.f32.mrf.mxu0
  %613 = vmatprep.mubr.f32.mxu0 0.0
  %614 = vmatmul.mubr.f32.gmra.mxu0 %v446
  %v615 = vpop.f32.mrf.mxu0
  %v616 = vadd.f32 0.0, %v615
  %v617 = vpop.f32.mrf.mxu0
  %618 = vmatprep.mubr.f32.mxu0 0.0
  %619 = vmatmul.mubr.f32.gmra.mxu0 %v449
  %v620 = vpop.f32.mrf.mxu0
  %v621 = vadd.f32 0.0, %v620
  %v622 = vpop.f32.mrf.mxu0
  %623 = vmatprep.mubr.f32.mxu0 0.0
  %624 = vmatmul.mubr.f32.gmra.mxu0 %v452
  %v625 = vpop.f32.mrf.mxu0
  %v626 = vadd.f32 0.0, %v625
  %v627 = vpop.f32.mrf.mxu0
  %628 = vmatprep.mubr.f32.mxu0 0.0
  %629 = vmatmul.mubr.f32.gmra.mxu0 %v455
  %v630 = vpop.f32.mrf.mxu0
  %v631 = vadd.f32 0.0, %v630
  %v632 = vpop.f32.mrf.mxu0
  %633 = vmatprep.mubr.f32.mxu0 0.0
  %634 = vmatmul.mubr.f32.gmra.mxu0 %v458
  %v635 = vpop.f32.mrf.mxu0
  %v636 = vadd.f32 0.0, %v635
  %v637 = vpop.f32.mrf.mxu0
  %638 = vmatprep.mubr.f32.mxu0 0.0
  %639 = vmatmul.mubr.f32.gmra.mxu0 %v461
  %v640 = vpop.f32.mrf.mxu0
  %v641 = vadd.f32 0.0, %v640
  %v642 = vpop.f32.mrf.mxu0
  %643 = vmatprep.mubr.f32.mxu0 0.0
  %644 = vmatmul.mubr.f32.gmra.mxu0 %v464
  %v645 = vpop.f32.mrf.mxu0
  %v646 = vadd.f32 0.0, %v645
  %v647 = vpop.f32.mrf.mxu0
  %648 = vmatprep.mubr.f32.mxu0 0.0
  %649 = vmatmul.mubr.f32.gmra.mxu0 %v467
  %v650 = vpop.f32.mrf.mxu0
  %v651 = vadd.f32 0.0, %v650
  %v652 = vpop.f32.mrf.mxu0
  %653 = vmatprep.mubr.f32.mxu0 0.0
  %654 = vmatmul.mubr.f32.gmra.mxu0 %v470
  %v655 = vpop.f32.mrf.mxu0
  %v656 = vadd.f32 0.0, %v655
  %v657 = vpop.f32.mrf.mxu0
  %658 = vmatprep.mubr.f32.mxu0 0.0
  %659 = vmatmul.mubr.f32.gmra.mxu0 %v473
  %v660 = vpop.f32.mrf.mxu0
  %v661 = vadd.f32 0.0, %v660
  %v662 = vpop.f32.mrf.mxu0
  %663 = vdwg.mxu0
  %v664 = vld [vmem:[%s9] sm:$0x1]
  %v666 = vlaneseq
  %v667 = vshrl.u32 %v666, 7
  %v668 = vsub.s32 0, %v667
  %v669 = vrot.slane %v664, %v668
  %v671 = vadd.f32 %v546, %v669
  %v672 = vadd.f32 %v551, %v669
  %v673 = vadd.f32 %v556, %v669
  %v674 = vadd.f32 %v561, %v669
  %v675 = vadd.f32 %v566, %v669
  %v676 = vadd.f32 %v571, %v669
  %v677 = vadd.f32 %v576, %v669
  %v678 = vadd.f32 %v581, %v669
  %v679 = vtanh.pop %v671
  %v680 = vtanh.pop %v672
  %v681 = vtanh.pop %v673
  %v682 = vtanh.pop %v674
  %v683 = vtanh.pop %v675
  %v684 = vtanh.pop %v676
  %v685 = vtanh.pop %v677
  %v686 = vtanh.pop %v678
  %v687 = vmul.f32 %v679, %v679
  %v688 = vmul.f32 %v680, %v680
  %v689 = vmul.f32 %v681, %v681
  %v690 = vmul.f32 %v682, %v682
  %v691 = vmul.f32 %v683, %v683
  %v692 = vmul.f32 %v684, %v684
  %v693 = vmul.f32 %v685, %v685
  %v694 = vmul.f32 %v686, %v686
  %v695 = vsub.f32 1.0, %v687
  %v696 = vsub.f32 1.0, %v688
  %v697 = vsub.f32 1.0, %v689
  %v698 = vsub.f32 1.0, %v690
  %v699 = vsub.f32 1.0, %v691
  %v700 = vsub.f32 1.0, %v692
  %v701 = vsub.f32 1.0, %v693
  %v702 = vsub.f32 1.0, %v694
  %v703 = vmul.f32 %v586, %v695
  %v704 = vmul.f32 %v591, %v696
  %v705 = vmul.f32 %v596, %v697
  %v706 = vmul.f32 %v601, %v698
  %v707 = vmul.f32 %v606, %v699
  %v708 = vmul.f32 %v611, %v700
  %v709 = vmul.f32 %v616, %v701
  %v710 = vmul.f32 %v621, %v702
  %v711 = vmul.f32 %v626, %v695
  %v712 = vmul.f32 %v631, %v696
  %v713 = vmul.f32 %v636, %v697
  %v714 = vmul.f32 %v641, %v698
  %v715 = vmul.f32 %v646, %v699
  %v716 = vmul.f32 %v651, %v700
  %v717 = vmul.f32 %v656, %v701
  %v718 = vmul.f32 %v661, %v702
  %v719 = vsel %vm402, %v703, 0.0
  %v720 = vrot.slane %v719, 4
  %v721 = vadd.f32 %v719, %v720
  %v722 = vrot.slane %v721, 2
  %v723 = vadd.f32 %v721, %v722
  %v724 = vrot.slane %v723, 1
  %v725 = vadd.f32 %v723, %v724
  %v726 = vsel %vm402, %v704, 0.0
  %v727 = vrot.slane %v726, 4
  %v728 = vadd.f32 %v726, %v727
  %v729 = vrot.slane %v728, 2
  %v730 = vadd.f32 %v728, %v729
  %v731 = vrot.slane %v730, 1
  %v732 = vadd.f32 %v730, %v731
  %v733 = vsel %vm402, %v705, 0.0
  %v734 = vrot.slane %v733, 4
  %v735 = vadd.f32 %v733, %v734
  %v736 = vrot.slane %v735, 2
  %v737 = vadd.f32 %v735, %v736
  %v738 = vrot.slane %v737, 1
  %v739 = vadd.f32 %v737, %v738
  %v740 = vsel %vm402, %v706, 0.0
  %v741 = vrot.slane %v740, 4
  %v742 = vadd.f32 %v740, %v741
  %v743 = vrot.slane %v742, 2
  %v744 = vadd.f32 %v742, %v743
  %v745 = vrot.slane %v744, 1
  %v746 = vadd.f32 %v744, %v745
  %v747 = vsel %vm402, %v707, 0.0
  %v748 = vrot.slane %v747, 4
  %v749 = vadd.f32 %v747, %v748
  %v750 = vrot.slane %v749, 2
  %v751 = vadd.f32 %v749, %v750
  %v752 = vrot.slane %v751, 1
  %v753 = vadd.f32 %v751, %v752
  %v754 = vsel %vm402, %v708, 0.0
  %v755 = vrot.slane %v754, 4
  %v756 = vadd.f32 %v754, %v755
  %v757 = vrot.slane %v756, 2
  %v758 = vadd.f32 %v756, %v757
  %v759 = vrot.slane %v758, 1
  %v760 = vadd.f32 %v758, %v759
  %v761 = vsel %vm402, %v709, 0.0
  %v762 = vrot.slane %v761, 4
  %v763 = vadd.f32 %v761, %v762
  %v764 = vrot.slane %v763, 2
  %v765 = vadd.f32 %v763, %v764
  %v766 = vrot.slane %v765, 1
  %v767 = vadd.f32 %v765, %v766
  %v768 = vsel %vm402, %v710, 0.0
  %v769 = vrot.slane %v768, 4
  %v770 = vadd.f32 %v768, %v769
  %v771 = vrot.slane %v770, 2
  %v772 = vadd.f32 %v770, %v771
  %v773 = vrot.slane %v772, 1
  %v774 = vadd.f32 %v772, %v773
  %v775 = vsel %vm402, %v711, 0.0
  %v776 = vrot.slane %v775, 4
  %v777 = vadd.f32 %v775, %v776
  %v778 = vrot.slane %v777, 2
  %v779 = vadd.f32 %v777, %v778
  %v780 = vrot.slane %v779, 1
  %v781 = vadd.f32 %v779, %v780
  %v782 = vsel %vm402, %v712, 0.0
  %v783 = vrot.slane %v782, 4
  %v784 = vadd.f32 %v782, %v783
  %v785 = vrot.slane %v784, 2
  %v786 = vadd.f32 %v784, %v785
  %v787 = vrot.slane %v786, 1
  %v788 = vadd.f32 %v786, %v787
  %v789 = vsel %vm402, %v713, 0.0
  %v790 = vrot.slane %v789, 4
  %v791 = vadd.f32 %v789, %v790
  %v792 = vrot.slane %v791, 2
  %v793 = vadd.f32 %v791, %v792
  %v794 = vrot.slane %v793, 1
  %v795 = vadd.f32 %v793, %v794
  %v796 = vsel %vm402, %v714, 0.0
  %v797 = vrot.slane %v796, 4
  %v798 = vadd.f32 %v796, %v797
  %v799 = vrot.slane %v798, 2
  %v800 = vadd.f32 %v798, %v799
  %v801 = vrot.slane %v800, 1
  %v802 = vadd.f32 %v800, %v801
  %v803 = vsel %vm402, %v715, 0.0
  %v804 = vrot.slane %v803, 4
  %v805 = vadd.f32 %v803, %v804
  %v806 = vrot.slane %v805, 2
  %v807 = vadd.f32 %v805, %v806
  %v808 = vrot.slane %v807, 1
  %v809 = vadd.f32 %v807, %v808
  %v810 = vsel %vm402, %v716, 0.0
  %v811 = vrot.slane %v810, 4
  %v812 = vadd.f32 %v810, %v811
  %v813 = vrot.slane %v812, 2
  %v814 = vadd.f32 %v812, %v813
  %v815 = vrot.slane %v814, 1
  %v816 = vadd.f32 %v814, %v815
  %v817 = vsel %vm402, %v717, 0.0
  %v818 = vrot.slane %v817, 4
  %v819 = vadd.f32 %v817, %v818
  %v820 = vrot.slane %v819, 2
  %v821 = vadd.f32 %v819, %v820
  %v822 = vrot.slane %v821, 1
  %v823 = vadd.f32 %v821, %v822
  %v824 = vsel %vm402, %v718, 0.0
  %v825 = vrot.slane %v824, 4
  %v826 = vadd.f32 %v824, %v825
  %v827 = vrot.slane %v826, 2
  %v828 = vadd.f32 %v826, %v827
  %v829 = vrot.slane %v828, 1
  %v830 = vadd.f32 %v828, %v829
  %v831 = vld [vmem:[%s3] sm:$0xff]
  %v832 = vld [vmem:[%s3 + $0x8] sm:$0xff]
  %v833 = vld [vmem:[%s3 + $0x10] sm:$0xff]
  %v834 = vld [vmem:[%s3 + $0x18] sm:$0xff]
  %v835 = vld [vmem:[%s3 + $0x20] sm:$0xff]
  %v836 = vld [vmem:[%s3 + $0x28] sm:$0xff]
  %v837 = vld [vmem:[%s3 + $0x30] sm:$0xff]
  %v838 = vld [vmem:[%s3 + $0x38] sm:$0xff]
  %v839 = vld [vmem:[%s4] sm:$0xff]
  %v840 = vld [vmem:[%s4 + $0x8] sm:$0xff]
  %v841 = vld [vmem:[%s4 + $0x10] sm:$0xff]
  %v842 = vld [vmem:[%s4 + $0x18] sm:$0xff]
  %v843 = vld [vmem:[%s4 + $0x20] sm:$0xff]
  %v844 = vld [vmem:[%s4 + $0x28] sm:$0xff]
  %v845 = vld [vmem:[%s4 + $0x30] sm:$0xff]
  %v846 = vld [vmem:[%s4 + $0x38] sm:$0xff]
  %v847 = vld [vmem:[%s5] sm:$0xff]
  %v848 = vld [vmem:[%s5 + $0x8] sm:$0xff]
  %v849 = vld [vmem:[%s5 + $0x10] sm:$0xff]
  %v850 = vld [vmem:[%s5 + $0x18] sm:$0xff]
  %v851 = vld [vmem:[%s5 + $0x20] sm:$0xff]
  %v852 = vld [vmem:[%s5 + $0x28] sm:$0xff]
  %v853 = vld [vmem:[%s5 + $0x30] sm:$0xff]
  %v854 = vld [vmem:[%s5 + $0x38] sm:$0xff]
  %v855 = vld [vmem:[%s11] sm:$0xff]
  %v856 = vld [vmem:[%s11 + $0x8] sm:$0xff]
  %v857 = vld [vmem:[%s11 + $0x10] sm:$0xff]
  %vm858 = vcmask 195584
  %v860 = vsel %vm858, %v831, 0
  %v863 = vsel %vm858, %v832, 0
  %v866 = vsel %vm858, %v833, 0
  %v869 = vsel %vm858, %v834, 0
  %v872 = vsel %vm858, %v835, 0
  %v875 = vsel %vm858, %v836, 0
  %v878 = vsel %vm858, %v837, 0
  %v881 = vsel %vm858, %v838, 0
  %v884 = vsel %vm858, %v839, 0
  %v887 = vsel %vm858, %v840, 0
  %v890 = vsel %vm858, %v841, 0
  %v893 = vsel %vm858, %v842, 0
  %v896 = vsel %vm858, %v843, 0
  %v899 = vsel %vm858, %v844, 0
  %v902 = vsel %vm858, %v845, 0
  %v905 = vsel %vm858, %v846, 0
  %v908 = vsel %vm858, %v847, 0
  %v911 = vsel %vm858, %v848, 0
  %v914 = vsel %vm858, %v849, 0
  %v917 = vsel %vm858, %v850, 0
  %v920 = vsel %vm858, %v851, 0
  %v923 = vsel %vm858, %v852, 0
  %v926 = vsel %vm858, %v853, 0
  %v929 = vsel %vm858, %v854, 0
  %931 = vmatprep.subr.mxu0 0.0
  %932 = vmatpush1.msra.mxu0 0.0
  %933 = vmatprep.subr.mxu0 0.0
  %934 = vmatpush1.msra.mxu0 0.0
  %935 = vmatprep.subr.mxu0 0.0
  %936 = vmatpush1.msra.mxu0 0.0
  %937 = vmatprep.subr.mxu0 0.0
  %938 = vmatpush1.msra.mxu0 0.0
  %939 = vmatprep.subr.mxu0 0.0
  %940 = vmatpush1.msra.mxu0 0.0
  %941 = vmatprep.subr.mxu0 0.0
  %942 = vmatpush1.msra.mxu0 0.0
  %943 = vmatprep.subr.mxu0 0.0
  %944 = vmatpush1.msra.mxu0 0.0
  %945 = vmatprep.subr.mxu0 0.0
  %946 = vmatpush1.msra.mxu0 0.0
  %947 = vmatprep.subr.mxu0 0.0
  %948 = vmatpush1.msra.mxu0 0.0
  %949 = vmatprep.subr.mxu0 0.0
  %950 = vmatpush1.msra.mxu0 0.0
  %951 = vmatprep.subr.mxu0 0.0
  %952 = vmatpush1.msra.mxu0 0.0
  %953 = vmatprep.subr.mxu0 0.0
  %954 = vmatpush1.msra.mxu0 0.0
  %955 = vmatprep.subr.mxu0 0.0
  %956 = vmatpush1.msra.mxu0 0.0
  %957 = vmatprep.subr.mxu0 0.0
  %958 = vmatpush1.msra.mxu0 %v857
  %959 = vmatprep.subr.mxu0 0.0
  %960 = vmatpush1.msra.mxu0 %v856
  %961 = vmatprep.subr.mxu0 0.0
  %962 = vmatpush1.msra.mxu0 %v855
  %963 = vmatprep.subr.mxu0 0.0
  %964 = vmatpush2.msra.mxu0 0.0
  %965 = vmatprep.subr.mxu0 0.0
  %966 = vmatpush2.msra.mxu0 0.0
  %967 = vmatprep.subr.mxu0 0.0
  %968 = vmatpush2.msra.mxu0 0.0
  %969 = vmatprep.subr.mxu0 0.0
  %970 = vmatpush2.msra.mxu0 0.0
  %971 = vmatprep.subr.mxu0 0.0
  %972 = vmatpush2.msra.mxu0 0.0
  %973 = vmatprep.subr.mxu0 0.0
  %974 = vmatpush2.msra.mxu0 0.0
  %975 = vmatprep.subr.mxu0 0.0
  %976 = vmatpush2.msra.mxu0 0.0
  %977 = vmatprep.subr.mxu0 0.0
  %978 = vmatpush2.msra.mxu0 0.0
  %979 = vmatprep.subr.mxu0 0.0
  %980 = vmatpush2.msra.mxu0 0.0
  %981 = vmatprep.subr.mxu0 0.0
  %982 = vmatpush2.msra.mxu0 0.0
  %983 = vmatprep.subr.mxu0 0.0
  %984 = vmatpush2.msra.mxu0 0.0
  %985 = vmatprep.subr.mxu0 0.0
  %986 = vmatpush2.msra.mxu0 0.0
  %987 = vmatprep.subr.mxu0 0.0
  %988 = vmatpush2.msra.mxu0 0.0
  %989 = vmatprep.subr.mxu0 0.0
  %990 = vmatpush2.msra.mxu0 0.0
  %991 = vmatprep.subr.mxu0 0.0
  %992 = vmatpush2.msra.mxu0 0.0
  %993 = vmatprep.subr.mxu0 0.0
  %994 = vmatpush2.msra.mxu0 0.0
  %995 = vmatprep.mubr.f32.mxu0 0.0
  %996 = vmatmul.mubr.f32.gmra.mxu0 %v860
  %v997 = vpop.f32.mrf.mxu0
  %v998 = vadd.f32 0.0, %v997
  %v999 = vpop.f32.mrf.mxu0
  %1000 = vmatprep.mubr.f32.mxu0 0.0
  %1001 = vmatmul.mubr.f32.gmra.mxu0 %v863
  %v1002 = vpop.f32.mrf.mxu0
  %v1003 = vadd.f32 0.0, %v1002
  %v1004 = vpop.f32.mrf.mxu0
  %1005 = vmatprep.mubr.f32.mxu0 0.0
  %1006 = vmatmul.mubr.f32.gmra.mxu0 %v866
  %v1007 = vpop.f32.mrf.mxu0
  %v1008 = vadd.f32 0.0, %v1007
  %v1009 = vpop.f32.mrf.mxu0
  %1010 = vmatprep.mubr.f32.mxu0 0.0
  %1011 = vmatmul.mubr.f32.gmra.mxu0 %v869
  %v1012 = vpop.f32.mrf.mxu0
  %v1013 = vadd.f32 0.0, %v1012
  %v1014 = vpop.f32.mrf.mxu0
  %1015 = vmatprep.mubr.f32.mxu0 0.0
  %1016 = vmatmul.mubr.f32.gmra.mxu0 %v872
  %v1017 = vpop.f32.mrf.mxu0
  %v1018 = vadd.f32 0.0, %v1017
  %v1019 = vpop.f32.mrf.mxu0
  %1020 = vmatprep.mubr.f32.mxu0 0.0
  %1021 = vmatmul.mubr.f32.gmra.mxu0 %v875
  %v1022 = vpop.f32.mrf.mxu0
  %v1023 = vadd.f32 0.0, %v1022
  %v1024 = vpop.f32.mrf.mxu0
  %1025 = vmatprep.mubr.f32.mxu0 0.0
  %1026 = vmatmul.mubr.f32.gmra.mxu0 %v878
  %v1027 = vpop.f32.mrf.mxu0
  %v1028 = vadd.f32 0.0, %v1027
  %v1029 = vpop.f32.mrf.mxu0
  %1030 = vmatprep.mubr.f32.mxu0 0.0
  %1031 = vmatmul.mubr.f32.gmra.mxu0 %v881
  %v1032 = vpop.f32.mrf.mxu0
  %v1033 = vadd.f32 0.0, %v1032
  %v1034 = vpop.f32.mrf.mxu0
  %1035 = vmatprep.mubr.f32.mxu0 0.0
  %1036 = vmatmul.mubr.f32.gmra.mxu0 %v884
  %v1037 = vpop.f32.mrf.mxu0
  %v1038 = vadd.f32 0.0, %v1037
  %v1039 = vpop.f32.mrf.mxu0
  %1040 = vmatprep.mubr.f32.mxu0 0.0
  %1041 = vmatmul.mubr.f32.gmra.mxu0 %v887
  %v1042 = vpop.f32.mrf.mxu0
  %v1043 = vadd.f32 0.0, %v1042
  %v1044 = vpop.f32.mrf.mxu0
  %1045 = vmatprep.mubr.f32.mxu0 0.0
  %1046 = vmatmul.mubr.f32.gmra.mxu0 %v890
  %v1047 = vpop.f32.mrf.mxu0
  %v1048 = vadd.f32 0.0, %v1047
  %v1049 = vpop.f32.mrf.mxu0
  %1050 = vmatprep.mubr.f32.mxu0 0.0
  %1051 = vmatmul.mubr.f32.gmra.mxu0 %v893
  %v1052 = vpop.f32.mrf.mxu0
  %v1053 = vadd.f32 0.0, %v1052
  %v1054 = vpop.f32.mrf.mxu0
  %1055 = vmatprep.mubr.f32.mxu0 0.0
  %1056 = vmatmul.mubr.f32.gmra.mxu0 %v896
  %v1057 = vpop.f32.mrf.mxu0
  %v1058 = vadd.f32 0.0, %v1057
  %v1059 = vpop.f32.mrf.mxu0
  %1060 = vmatprep.mubr.f32.mxu0 0.0
  %1061 = vmatmul.mubr.f32.gmra.mxu0 %v899
  %v1062 = vpop.f32.mrf.mxu0
  %v1063 = vadd.f32 0.0, %v1062
  %v1064 = vpop.f32.mrf.mxu0
  %1065 = vmatprep.mubr.f32.mxu0 0.0
  %1066 = vmatmul.mubr.f32.gmra.mxu0 %v902
  %v1067 = vpop.f32.mrf.mxu0
  %v1068 = vadd.f32 0.0, %v1067
  %v1069 = vpop.f32.mrf.mxu0
  %1070 = vmatprep.mubr.f32.mxu0 0.0
  %1071 = vmatmul.mubr.f32.gmra.mxu0 %v905
  %v1072 = vpop.f32.mrf.mxu0
  %v1073 = vadd.f32 0.0, %v1072
  %v1074 = vpop.f32.mrf.mxu0
  %1075 = vmatprep.mubr.f32.mxu0 0.0
  %1076 = vmatmul.mubr.f32.gmra.mxu0 %v908
  %v1077 = vpop.f32.mrf.mxu0
  %v1078 = vadd.f32 0.0, %v1077
  %v1079 = vpop.f32.mrf.mxu0
  %1080 = vmatprep.mubr.f32.mxu0 0.0
  %1081 = vmatmul.mubr.f32.gmra.mxu0 %v911
  %v1082 = vpop.f32.mrf.mxu0
  %v1083 = vadd.f32 0.0, %v1082
  %v1084 = vpop.f32.mrf.mxu0
  %1085 = vmatprep.mubr.f32.mxu0 0.0
  %1086 = vmatmul.mubr.f32.gmra.mxu0 %v914
  %v1087 = vpop.f32.mrf.mxu0
  %v1088 = vadd.f32 0.0, %v1087
  %v1089 = vpop.f32.mrf.mxu0
  %1090 = vmatprep.mubr.f32.mxu0 0.0
  %1091 = vmatmul.mubr.f32.gmra.mxu0 %v917
  %v1092 = vpop.f32.mrf.mxu0
  %v1093 = vadd.f32 0.0, %v1092
  %v1094 = vpop.f32.mrf.mxu0
  %1095 = vmatprep.mubr.f32.mxu0 0.0
  %1096 = vmatmul.mubr.f32.gmra.mxu0 %v920
  %v1097 = vpop.f32.mrf.mxu0
  %v1098 = vadd.f32 0.0, %v1097
  %v1099 = vpop.f32.mrf.mxu0
  %1100 = vmatprep.mubr.f32.mxu0 0.0
  %1101 = vmatmul.mubr.f32.gmra.mxu0 %v923
  %v1102 = vpop.f32.mrf.mxu0
  %v1103 = vadd.f32 0.0, %v1102
  %v1104 = vpop.f32.mrf.mxu0
  %1105 = vmatprep.mubr.f32.mxu0 0.0
  %1106 = vmatmul.mubr.f32.gmra.mxu0 %v926
  %v1107 = vpop.f32.mrf.mxu0
  %v1108 = vadd.f32 0.0, %v1107
  %v1109 = vpop.f32.mrf.mxu0
  %1110 = vmatprep.mubr.f32.mxu0 0.0
  %1111 = vmatmul.mubr.f32.gmra.mxu0 %v929
  %v1112 = vpop.f32.mrf.mxu0
  %v1113 = vadd.f32 0.0, %v1112
  %v1114 = vpop.f32.mrf.mxu0
  %1115 = vdwg.mxu0
  %v1116 = vld [vmem:[%s12] sm:$0x1]
  %v1118 = vlaneseq
  %v1119 = vshrl.u32 %v1118, 7
  %v1120 = vsub.s32 0, %v1119
  %v1121 = vrot.slane %v1116, %v1120
  %v1123 = vadd.f32 %v998, %v1121
  %v1124 = vadd.f32 %v1003, %v1121
  %v1125 = vadd.f32 %v1008, %v1121
  %v1126 = vadd.f32 %v1013, %v1121
  %v1127 = vadd.f32 %v1018, %v1121
  %v1128 = vadd.f32 %v1023, %v1121
  %v1129 = vadd.f32 %v1028, %v1121
  %v1130 = vadd.f32 %v1033, %v1121
  %v1131 = vtanh.pop %v1123
  %v1132 = vtanh.pop %v1124
  %v1133 = vtanh.pop %v1125
  %v1134 = vtanh.pop %v1126
  %v1135 = vtanh.pop %v1127
  %v1136 = vtanh.pop %v1128
  %v1137 = vtanh.pop %v1129
  %v1138 = vtanh.pop %v1130
  %v1139 = vmul.f32 %v1131, %v1131
  %v1140 = vmul.f32 %v1132, %v1132
  %v1141 = vmul.f32 %v1133, %v1133
  %v1142 = vmul.f32 %v1134, %v1134
  %v1143 = vmul.f32 %v1135, %v1135
  %v1144 = vmul.f32 %v1136, %v1136
  %v1145 = vmul.f32 %v1137, %v1137
  %v1146 = vmul.f32 %v1138, %v1138
  %v1147 = vsub.f32 1.0, %v1139
  %v1148 = vsub.f32 1.0, %v1140
  %v1149 = vsub.f32 1.0, %v1141
  %v1150 = vsub.f32 1.0, %v1142
  %v1151 = vsub.f32 1.0, %v1143
  %v1152 = vsub.f32 1.0, %v1144
  %v1153 = vsub.f32 1.0, %v1145
  %v1154 = vsub.f32 1.0, %v1146
  %v1155 = vmul.f32 %v1038, %v1147
  %v1156 = vmul.f32 %v1043, %v1148
  %v1157 = vmul.f32 %v1048, %v1149
  %v1158 = vmul.f32 %v1053, %v1150
  %v1159 = vmul.f32 %v1058, %v1151
  %v1160 = vmul.f32 %v1063, %v1152
  %v1161 = vmul.f32 %v1068, %v1153
  %v1162 = vmul.f32 %v1073, %v1154
  %v1163 = vmul.f32 %v1078, %v1147
  %v1164 = vmul.f32 %v1083, %v1148
  %v1165 = vmul.f32 %v1088, %v1149
  %v1166 = vmul.f32 %v1093, %v1150
  %v1167 = vmul.f32 %v1098, %v1151
  %v1168 = vmul.f32 %v1103, %v1152
  %v1169 = vmul.f32 %v1108, %v1153
  %v1170 = vmul.f32 %v1113, %v1154
  %v1171 = vld [vmem:[%s13] sm:$0xff]
  %v1172 = vld [vmem:[%s13 + $0x8] sm:$0xff]
  %v1173 = vld [vmem:[%s13 + $0x10] sm:$0xff]
  %v1174 = vld [vmem:[%s13 + $0x18] sm:$0x1]
  %v1176 = vsel %vm402, %v1131, 0
  %v1179 = vsel %vm402, %v1132, 0
  %v1182 = vsel %vm402, %v1133, 0
  %v1185 = vsel %vm402, %v1134, 0
  %v1188 = vsel %vm402, %v1135, 0
  %v1191 = vsel %vm402, %v1136, 0
  %v1194 = vsel %vm402, %v1137, 0
  %v1197 = vsel %vm402, %v1138, 0
  %v1200 = vsel %vm402, %v1155, 0
  %v1203 = vsel %vm402, %v1156, 0
  %v1206 = vsel %vm402, %v1157, 0
  %v1209 = vsel %vm402, %v1158, 0
  %v1212 = vsel %vm402, %v1159, 0
  %v1215 = vsel %vm402, %v1160, 0
  %v1218 = vsel %vm402, %v1161, 0
  %v1221 = vsel %vm402, %v1162, 0
  %v1224 = vsel %vm402, %v1163, 0
  %v1227 = vsel %vm402, %v1164, 0
  %v1230 = vsel %vm402, %v1165, 0
  %v1233 = vsel %vm402, %v1166, 0
  %v1236 = vsel %vm402, %v1167, 0
  %v1239 = vsel %vm402, %v1168, 0
  %v1242 = vsel %vm402, %v1169, 0
  %v1245 = vsel %vm402, %v1170, 0
  %v1248 = vsel %vm475, %v1174, 0
  %1250 = vmatprep.subr.mxu0 0.0
  %1251 = vmatpush1.msra.mxu0 0.0
  %1252 = vmatprep.subr.mxu0 0.0
  %1253 = vmatpush1.msra.mxu0 0.0
  %1254 = vmatprep.subr.mxu0 0.0
  %1255 = vmatpush1.msra.mxu0 0.0
  %1256 = vmatprep.subr.mxu0 0.0
  %1257 = vmatpush1.msra.mxu0 0.0
  %1258 = vmatprep.subr.mxu0 0.0
  %1259 = vmatpush1.msra.mxu0 0.0
  %1260 = vmatprep.subr.mxu0 0.0
  %1261 = vmatpush1.msra.mxu0 0.0
  %1262 = vmatprep.subr.mxu0 0.0
  %1263 = vmatpush1.msra.mxu0 0.0
  %1264 = vmatprep.subr.mxu0 0.0
  %1265 = vmatpush1.msra.mxu0 0.0
  %1266 = vmatprep.subr.mxu0 0.0
  %1267 = vmatpush1.msra.mxu0 0.0
  %1268 = vmatprep.subr.mxu0 0.0
  %1269 = vmatpush1.msra.mxu0 0.0
  %1270 = vmatprep.subr.mxu0 0.0
  %1271 = vmatpush1.msra.mxu0 0.0
  %1272 = vmatprep.subr.mxu0 0.0
  %1273 = vmatpush1.msra.mxu0 0.0
  %1274 = vmatprep.subr.mxu0 0.0
  %1275 = vmatpush1.msra.mxu0 %v1248
  %1276 = vmatprep.subr.mxu0 0.0
  %1277 = vmatpush1.msra.mxu0 %v1173
  %1278 = vmatprep.subr.mxu0 0.0
  %1279 = vmatpush1.msra.mxu0 %v1172
  %1280 = vmatprep.subr.mxu0 0.0
  %1281 = vmatpush1.msra.mxu0 %v1171
  %1282 = vmatprep.subr.mxu0 0.0
  %1283 = vmatpush2.msra.mxu0 0.0
  %1284 = vmatprep.subr.mxu0 0.0
  %1285 = vmatpush2.msra.mxu0 0.0
  %1286 = vmatprep.subr.mxu0 0.0
  %1287 = vmatpush2.msra.mxu0 0.0
  %1288 = vmatprep.subr.mxu0 0.0
  %1289 = vmatpush2.msra.mxu0 0.0
  %1290 = vmatprep.subr.mxu0 0.0
  %1291 = vmatpush2.msra.mxu0 0.0
  %1292 = vmatprep.subr.mxu0 0.0
  %1293 = vmatpush2.msra.mxu0 0.0
  %1294 = vmatprep.subr.mxu0 0.0
  %1295 = vmatpush2.msra.mxu0 0.0
  %1296 = vmatprep.subr.mxu0 0.0
  %1297 = vmatpush2.msra.mxu0 0.0
  %1298 = vmatprep.subr.mxu0 0.0
  %1299 = vmatpush2.msra.mxu0 0.0
  %1300 = vmatprep.subr.mxu0 0.0
  %1301 = vmatpush2.msra.mxu0 0.0
  %1302 = vmatprep.subr.mxu0 0.0
  %1303 = vmatpush2.msra.mxu0 0.0
  %1304 = vmatprep.subr.mxu0 0.0
  %1305 = vmatpush2.msra.mxu0 0.0
  %1306 = vmatprep.subr.mxu0 0.0
  %1307 = vmatpush2.msra.mxu0 0.0
  %1308 = vmatprep.subr.mxu0 0.0
  %1309 = vmatpush2.msra.mxu0 0.0
  %1310 = vmatprep.subr.mxu0 0.0
  %1311 = vmatpush2.msra.mxu0 0.0
  %1312 = vmatprep.subr.mxu0 0.0
  %1313 = vmatpush2.msra.mxu0 0.0
  %1314 = vmatprep.mubr.f32.mxu0 0.0
  %1315 = vmatmul.mubr.f32.gmra.mxu0 %v1176
  %v1316 = vpop.f32.mrf.mxu0
  %v1317 = vadd.f32 0.0, %v1316
  %v1318 = vpop.f32.mrf.mxu0
  %1319 = vmatprep.mubr.f32.mxu0 0.0
  %1320 = vmatmul.mubr.f32.gmra.mxu0 %v1179
  %v1321 = vpop.f32.mrf.mxu0
  %v1322 = vadd.f32 0.0, %v1321
  %v1323 = vpop.f32.mrf.mxu0
  %1324 = vmatprep.mubr.f32.mxu0 0.0
  %1325 = vmatmul.mubr.f32.gmra.mxu0 %v1182
  %v1326 = vpop.f32.mrf.mxu0
  %v1327 = vadd.f32 0.0, %v1326
  %v1328 = vpop.f32.mrf.mxu0
  %1329 = vmatprep.mubr.f32.mxu0 0.0
  %1330 = vmatmul.mubr.f32.gmra.mxu0 %v1185
  %v1331 = vpop.f32.mrf.mxu0
  %v1332 = vadd.f32 0.0, %v1331
  %v1333 = vpop.f32.mrf.mxu0
  %1334 = vmatprep.mubr.f32.mxu0 0.0
  %1335 = vmatmul.mubr.f32.gmra.mxu0 %v1188
  %v1336 = vpop.f32.mrf.mxu0
  %v1337 = vadd.f32 0.0, %v1336
  %v1338 = vpop.f32.mrf.mxu0
  %1339 = vmatprep.mubr.f32.mxu0 0.0
  %1340 = vmatmul.mubr.f32.gmra.mxu0 %v1191
  %v1341 = vpop.f32.mrf.mxu0
  %v1342 = vadd.f32 0.0, %v1341
  %v1343 = vpop.f32.mrf.mxu0
  %1344 = vmatprep.mubr.f32.mxu0 0.0
  %1345 = vmatmul.mubr.f32.gmra.mxu0 %v1194
  %v1346 = vpop.f32.mrf.mxu0
  %v1347 = vadd.f32 0.0, %v1346
  %v1348 = vpop.f32.mrf.mxu0
  %1349 = vmatprep.mubr.f32.mxu0 0.0
  %1350 = vmatmul.mubr.f32.gmra.mxu0 %v1197
  %v1351 = vpop.f32.mrf.mxu0
  %v1352 = vadd.f32 0.0, %v1351
  %v1353 = vpop.f32.mrf.mxu0
  %1354 = vmatprep.mubr.f32.mxu0 0.0
  %1355 = vmatmul.mubr.f32.gmra.mxu0 %v1200
  %v1356 = vpop.f32.mrf.mxu0
  %v1357 = vadd.f32 0.0, %v1356
  %v1358 = vpop.f32.mrf.mxu0
  %1359 = vmatprep.mubr.f32.mxu0 0.0
  %1360 = vmatmul.mubr.f32.gmra.mxu0 %v1203
  %v1361 = vpop.f32.mrf.mxu0
  %v1362 = vadd.f32 0.0, %v1361
  %v1363 = vpop.f32.mrf.mxu0
  %1364 = vmatprep.mubr.f32.mxu0 0.0
  %1365 = vmatmul.mubr.f32.gmra.mxu0 %v1206
  %v1366 = vpop.f32.mrf.mxu0
  %v1367 = vadd.f32 0.0, %v1366
  %v1368 = vpop.f32.mrf.mxu0
  %1369 = vmatprep.mubr.f32.mxu0 0.0
  %1370 = vmatmul.mubr.f32.gmra.mxu0 %v1209
  %v1371 = vpop.f32.mrf.mxu0
  %v1372 = vadd.f32 0.0, %v1371
  %v1373 = vpop.f32.mrf.mxu0
  %1374 = vmatprep.mubr.f32.mxu0 0.0
  %1375 = vmatmul.mubr.f32.gmra.mxu0 %v1212
  %v1376 = vpop.f32.mrf.mxu0
  %v1377 = vadd.f32 0.0, %v1376
  %v1378 = vpop.f32.mrf.mxu0
  %1379 = vmatprep.mubr.f32.mxu0 0.0
  %1380 = vmatmul.mubr.f32.gmra.mxu0 %v1215
  %v1381 = vpop.f32.mrf.mxu0
  %v1382 = vadd.f32 0.0, %v1381
  %v1383 = vpop.f32.mrf.mxu0
  %1384 = vmatprep.mubr.f32.mxu0 0.0
  %1385 = vmatmul.mubr.f32.gmra.mxu0 %v1218
  %v1386 = vpop.f32.mrf.mxu0
  %v1387 = vadd.f32 0.0, %v1386
  %v1388 = vpop.f32.mrf.mxu0
  %1389 = vmatprep.mubr.f32.mxu0 0.0
  %1390 = vmatmul.mubr.f32.gmra.mxu0 %v1221
  %v1391 = vpop.f32.mrf.mxu0
  %v1392 = vadd.f32 0.0, %v1391
  %v1393 = vpop.f32.mrf.mxu0
  %1394 = vmatprep.mubr.f32.mxu0 0.0
  %1395 = vmatmul.mubr.f32.gmra.mxu0 %v1224
  %v1396 = vpop.f32.mrf.mxu0
  %v1397 = vadd.f32 0.0, %v1396
  %v1398 = vpop.f32.mrf.mxu0
  %1399 = vmatprep.mubr.f32.mxu0 0.0
  %1400 = vmatmul.mubr.f32.gmra.mxu0 %v1227
  %v1401 = vpop.f32.mrf.mxu0
  %v1402 = vadd.f32 0.0, %v1401
  %v1403 = vpop.f32.mrf.mxu0
  %1404 = vmatprep.mubr.f32.mxu0 0.0
  %1405 = vmatmul.mubr.f32.gmra.mxu0 %v1230
  %v1406 = vpop.f32.mrf.mxu0
  %v1407 = vadd.f32 0.0, %v1406
  %v1408 = vpop.f32.mrf.mxu0
  %1409 = vmatprep.mubr.f32.mxu0 0.0
  %1410 = vmatmul.mubr.f32.gmra.mxu0 %v1233
  %v1411 = vpop.f32.mrf.mxu0
  %v1412 = vadd.f32 0.0, %v1411
  %v1413 = vpop.f32.mrf.mxu0
  %1414 = vmatprep.mubr.f32.mxu0 0.0
  %1415 = vmatmul.mubr.f32.gmra.mxu0 %v1236
  %v1416 = vpop.f32.mrf.mxu0
  %v1417 = vadd.f32 0.0, %v1416
  %v1418 = vpop.f32.mrf.mxu0
  %1419 = vmatprep.mubr.f32.mxu0 0.0
  %1420 = vmatmul.mubr.f32.gmra.mxu0 %v1239
  %v1421 = vpop.f32.mrf.mxu0
  %v1422 = vadd.f32 0.0, %v1421
  %v1423 = vpop.f32.mrf.mxu0
  %1424 = vmatprep.mubr.f32.mxu0 0.0
  %1425 = vmatmul.mubr.f32.gmra.mxu0 %v1242
  %v1426 = vpop.f32.mrf.mxu0
  %v1427 = vadd.f32 0.0, %v1426
  %v1428 = vpop.f32.mrf.mxu0
  %1429 = vmatprep.mubr.f32.mxu0 0.0
  %1430 = vmatmul.mubr.f32.gmra.mxu0 %v1245
  %v1431 = vpop.f32.mrf.mxu0
  %v1432 = vadd.f32 0.0, %v1431
  %v1433 = vpop.f32.mrf.mxu0
  %1434 = vdwg.mxu0
  %v1435 = vld [vmem:[%s14] sm:$0x1]
  %v1437 = vlaneseq
  %v1438 = vshrl.u32 %v1437, 7
  %v1439 = vsub.s32 0, %v1438
  %v1440 = vrot.slane %v1435, %v1439
  %v1442 = vadd.f32 %v1317, %v1440
  %v1443 = vadd.f32 %v1322, %v1440
  %v1444 = vadd.f32 %v1327, %v1440
  %v1445 = vadd.f32 %v1332, %v1440
  %v1446 = vadd.f32 %v1337, %v1440
  %v1447 = vadd.f32 %v1342, %v1440
  %v1448 = vadd.f32 %v1347, %v1440
  %v1449 = vadd.f32 %v1352, %v1440
  %v1450 = vtanh.pop %v1442
  %v1451 = vtanh.pop %v1443
  %v1452 = vtanh.pop %v1444
  %v1453 = vtanh.pop %v1445
  %v1454 = vtanh.pop %v1446
  %v1455 = vtanh.pop %v1447
  %v1456 = vtanh.pop %v1448
  %v1457 = vtanh.pop %v1449
  %v1458 = vmul.f32 %v1450, %v1450
  %v1459 = vmul.f32 %v1451, %v1451
  %v1460 = vmul.f32 %v1452, %v1452
  %v1461 = vmul.f32 %v1453, %v1453
  %v1462 = vmul.f32 %v1454, %v1454
  %v1463 = vmul.f32 %v1455, %v1455
  %v1464 = vmul.f32 %v1456, %v1456
  %v1465 = vmul.f32 %v1457, %v1457
  %v1466 = vsub.f32 1.0, %v1458
  %v1467 = vsub.f32 1.0, %v1459
  %v1468 = vsub.f32 1.0, %v1460
  %v1469 = vsub.f32 1.0, %v1461
  %v1470 = vsub.f32 1.0, %v1462
  %v1471 = vsub.f32 1.0, %v1463
  %v1472 = vsub.f32 1.0, %v1464
  %v1473 = vsub.f32 1.0, %v1465
  %v1474 = vmul.f32 %v1357, %v1466
  %v1475 = vmul.f32 %v1362, %v1467
  %v1476 = vmul.f32 %v1367, %v1468
  %v1477 = vmul.f32 %v1372, %v1469
  %v1478 = vmul.f32 %v1377, %v1470
  %v1479 = vmul.f32 %v1382, %v1471
  %v1480 = vmul.f32 %v1387, %v1472
  %v1481 = vmul.f32 %v1392, %v1473
  %v1482 = vmul.f32 %v1397, %v1466
  %v1483 = vmul.f32 %v1402, %v1467
  %v1484 = vmul.f32 %v1407, %v1468
  %v1485 = vmul.f32 %v1412, %v1469
  %v1486 = vmul.f32 %v1417, %v1470
  %v1487 = vmul.f32 %v1422, %v1471
  %v1488 = vmul.f32 %v1427, %v1472
  %v1489 = vmul.f32 %v1432, %v1473
  %v1490 = vsel %vm402, %v1474, 0.0
  %v1491 = vrot.slane %v1490, 4
  %v1492 = vadd.f32 %v1490, %v1491
  %v1493 = vrot.slane %v1492, 2
  %v1494 = vadd.f32 %v1492, %v1493
  %v1495 = vrot.slane %v1494, 1
  %v1496 = vadd.f32 %v1494, %v1495
  %v1497 = vsel %vm402, %v1475, 0.0
  %v1498 = vrot.slane %v1497, 4
  %v1499 = vadd.f32 %v1497, %v1498
  %v1500 = vrot.slane %v1499, 2
  %v1501 = vadd.f32 %v1499, %v1500
  %v1502 = vrot.slane %v1501, 1
  %v1503 = vadd.f32 %v1501, %v1502
  %v1504 = vsel %vm402, %v1476, 0.0
  %v1505 = vrot.slane %v1504, 4
  %v1506 = vadd.f32 %v1504, %v1505
  %v1507 = vrot.slane %v1506, 2
  %v1508 = vadd.f32 %v1506, %v1507
  %v1509 = vrot.slane %v1508, 1
  %v1510 = vadd.f32 %v1508, %v1509
  %v1511 = vsel %vm402, %v1477, 0.0
  %v1512 = vrot.slane %v1511, 4
  %v1513 = vadd.f32 %v1511, %v1512
  %v1514 = vrot.slane %v1513, 2
  %v1515 = vadd.f32 %v1513, %v1514
  %v1516 = vrot.slane %v1515, 1
  %v1517 = vadd.f32 %v1515, %v1516
  %v1518 = vsel %vm402, %v1478, 0.0
  %v1519 = vrot.slane %v1518, 4
  %v1520 = vadd.f32 %v1518, %v1519
  %v1521 = vrot.slane %v1520, 2
  %v1522 = vadd.f32 %v1520, %v1521
  %v1523 = vrot.slane %v1522, 1
  %v1524 = vadd.f32 %v1522, %v1523
  %v1525 = vsel %vm402, %v1479, 0.0
  %v1526 = vrot.slane %v1525, 4
  %v1527 = vadd.f32 %v1525, %v1526
  %v1528 = vrot.slane %v1527, 2
  %v1529 = vadd.f32 %v1527, %v1528
  %v1530 = vrot.slane %v1529, 1
  %v1531 = vadd.f32 %v1529, %v1530
  %v1532 = vsel %vm402, %v1480, 0.0
  %v1533 = vrot.slane %v1532, 4
  %v1534 = vadd.f32 %v1532, %v1533
  %v1535 = vrot.slane %v1534, 2
  %v1536 = vadd.f32 %v1534, %v1535
  %v1537 = vrot.slane %v1536, 1
  %v1538 = vadd.f32 %v1536, %v1537
  %v1539 = vsel %vm402, %v1481, 0.0
  %v1540 = vrot.slane %v1539, 4
  %v1541 = vadd.f32 %v1539, %v1540
  %v1542 = vrot.slane %v1541, 2
  %v1543 = vadd.f32 %v1541, %v1542
  %v1544 = vrot.slane %v1543, 1
  %v1545 = vadd.f32 %v1543, %v1544
  %v1546 = vsel %vm402, %v1482, 0.0
  %v1547 = vrot.slane %v1546, 4
  %v1548 = vadd.f32 %v1546, %v1547
  %v1549 = vrot.slane %v1548, 2
  %v1550 = vadd.f32 %v1548, %v1549
  %v1551 = vrot.slane %v1550, 1
  %v1552 = vadd.f32 %v1550, %v1551
  %v1553 = vsel %vm402, %v1483, 0.0
  %v1554 = vrot.slane %v1553, 4
  %v1555 = vadd.f32 %v1553, %v1554
  %v1556 = vrot.slane %v1555, 2
  %v1557 = vadd.f32 %v1555, %v1556
  %v1558 = vrot.slane %v1557, 1
  %v1559 = vadd.f32 %v1557, %v1558
  %v1560 = vsel %vm402, %v1484, 0.0
  %v1561 = vrot.slane %v1560, 4
  %v1562 = vadd.f32 %v1560, %v1561
  %v1563 = vrot.slane %v1562, 2
  %v1564 = vadd.f32 %v1562, %v1563
  %v1565 = vrot.slane %v1564, 1
  %v1566 = vadd.f32 %v1564, %v1565
  %v1567 = vsel %vm402, %v1485, 0.0
  %v1568 = vrot.slane %v1567, 4
  %v1569 = vadd.f32 %v1567, %v1568
  %v1570 = vrot.slane %v1569, 2
  %v1571 = vadd.f32 %v1569, %v1570
  %v1572 = vrot.slane %v1571, 1
  %v1573 = vadd.f32 %v1571, %v1572
  %v1574 = vsel %vm402, %v1486, 0.0
  %v1575 = vrot.slane %v1574, 4
  %v1576 = vadd.f32 %v1574, %v1575
  %v1577 = vrot.slane %v1576, 2
  %v1578 = vadd.f32 %v1576, %v1577
  %v1579 = vrot.slane %v1578, 1
  %v1580 = vadd.f32 %v1578, %v1579
  %v1581 = vsel %vm402, %v1487, 0.0
  %v1582 = vrot.slane %v1581, 4
  %v1583 = vadd.f32 %v1581, %v1582
  %v1584 = vrot.slane %v1583, 2
  %v1585 = vadd.f32 %v1583, %v1584
  %v1586 = vrot.slane %v1585, 1
  %v1587 = vadd.f32 %v1585, %v1586
  %v1588 = vsel %vm402, %v1488, 0.0
  %v1589 = vrot.slane %v1588, 4
  %v1590 = vadd.f32 %v1588, %v1589
  %v1591 = vrot.slane %v1590, 2
  %v1592 = vadd.f32 %v1590, %v1591
  %v1593 = vrot.slane %v1592, 1
  %v1594 = vadd.f32 %v1592, %v1593
  %v1595 = vsel %vm402, %v1489, 0.0
  %v1596 = vrot.slane %v1595, 4
  %v1597 = vadd.f32 %v1595, %v1596
  %v1598 = vrot.slane %v1597, 2
  %v1599 = vadd.f32 %v1597, %v1598
  %v1600 = vrot.slane %v1599, 1
  %v1601 = vadd.f32 %v1599, %v1600
  %v1602 = vld [vmem:[%s10] sm:$0x1]
  %v1604 = vlaneseq
  %v1605 = vshrl.u32 %v1604, 7
  %v1606 = vsub.s32 0, %v1605
  %v1607 = vrot.slane %v1602, %v1606
  %v1609 = vmul.f32 %v725, %v1607
  %v1610 = vmul.f32 %v732, %v1607
  %v1611 = vmul.f32 %v739, %v1607
  %v1612 = vmul.f32 %v746, %v1607
  %v1613 = vmul.f32 %v753, %v1607
  %v1614 = vmul.f32 %v760, %v1607
  %v1615 = vmul.f32 %v767, %v1607
  %v1616 = vmul.f32 %v774, %v1607
  %v1617 = vld [vmem:[%s15] sm:$0x1]
  %v1619 = vlaneseq
  %v1620 = vshrl.u32 %v1619, 7
  %v1621 = vsub.s32 0, %v1620
  %v1622 = vrot.slane %v1617, %v1621
  %v1624 = vmul.f32 %v1552, %v1622
  %v1625 = vmul.f32 %v1559, %v1622
  %v1626 = vmul.f32 %v1566, %v1622
  %v1627 = vmul.f32 %v1573, %v1622
  %v1628 = vmul.f32 %v1580, %v1622
  %v1629 = vmul.f32 %v1587, %v1622
  %v1630 = vmul.f32 %v1594, %v1622
  %v1631 = vmul.f32 %v1601, %v1622
  %v1632 = vadd.f32 %v1609, %v1624
  %v1633 = vadd.f32 %v1610, %v1625
  %v1634 = vadd.f32 %v1611, %v1626
  %v1635 = vadd.f32 %v1612, %v1627
  %v1636 = vadd.f32 %v1613, %v1628
  %v1637 = vadd.f32 %v1614, %v1629
  %v1638 = vadd.f32 %v1615, %v1630
  %v1639 = vadd.f32 %v1616, %v1631
  %v1640 = vmul.f32 %v781, %v1607
  %v1641 = vmul.f32 %v788, %v1607
  %v1642 = vmul.f32 %v795, %v1607
  %v1643 = vmul.f32 %v802, %v1607
  %v1644 = vmul.f32 %v809, %v1607
  %v1645 = vmul.f32 %v816, %v1607
  %v1646 = vmul.f32 %v823, %v1607
  %v1647 = vmul.f32 %v830, %v1607
  %v1648 = vmul.f32 %v1496, %v1622
  %v1649 = vmul.f32 %v1503, %v1622
  %v1650 = vmul.f32 %v1510, %v1622
  %v1651 = vmul.f32 %v1517, %v1622
  %v1652 = vmul.f32 %v1524, %v1622
  %v1653 = vmul.f32 %v1531, %v1622
  %v1654 = vmul.f32 %v1538, %v1622
  %v1655 = vmul.f32 %v1545, %v1622
  %v1656 = vadd.f32 %v1640, %v1648
  %v1657 = vadd.f32 %v1641, %v1649
  %v1658 = vadd.f32 %v1642, %v1650
  %v1659 = vadd.f32 %v1643, %v1651
  %v1660 = vadd.f32 %v1644, %v1652
  %v1661 = vadd.f32 %v1645, %v1653
  %v1662 = vadd.f32 %v1646, %v1654
  %v1663 = vadd.f32 %v1647, %v1655
  %v1672 = vrot.slane %v1633, 7
  %vm1673 = vcmask 1041409
  %v1674 = vsel %vm1673, %v1672, %v1632
  %v1675 = vrot.slane %v1634, 6
  %vm1676 = vcmask 1042434
  %v1677 = vsel %vm1676, %v1675, %v1674
  %v1678 = vrot.slane %v1635, 5
  %vm1679 = vcmask 1043459
  %v1680 = vsel %vm1679, %v1678, %v1677
  %v1681 = vrot.slane %v1636, 4
  %vm1682 = vcmask 1044484
  %v1683 = vsel %vm1682, %v1681, %v1680
  %v1684 = vrot.slane %v1637, 3
  %vm1685 = vcmask 1045509
  %v1686 = vsel %vm1685, %v1684, %v1683
  %v1687 = vrot.slane %v1638, 2
  %vm1688 = vcmask 1046534
  %v1689 = vsel %vm1688, %v1687, %v1686
  %v1690 = vrot.slane %v1639, 1
  %vm1691 = vcmask 1047559
  %v1692 = vsel %vm1691, %v1690, %v1689
  %v1702 = vrot.slane %v1657, 7
  %v1703 = vsel %vm1673, %v1702, %v1656
  %v1704 = vrot.slane %v1658, 6
  %v1705 = vsel %vm1676, %v1704, %v1703
  %v1706 = vrot.slane %v1659, 5
  %v1707 = vsel %vm1679, %v1706, %v1705
  %v1708 = vrot.slane %v1660, 4
  %v1709 = vsel %vm1682, %v1708, %v1707
  %v1710 = vrot.slane %v1661, 3
  %v1711 = vsel %vm1685, %v1710, %v1709
  %v1712 = vrot.slane %v1662, 2
  %v1713 = vsel %vm1688, %v1712, %v1711
  %v1714 = vrot.slane %v1663, 1
  %v1715 = vsel %vm1691, %v1714, %v1713
  %v1717 = vsel %vm402, %v1692, 0.0
  %1718 = vadd.xlane.f32.xlu0 %v1717
  %v1719 = vpop.xlane.xlu0 %1718
  %v1720 = vsel %vm402, %v1715, 0.0
  %1721 = vadd.xlane.f32.xlu0 %v1720
  %v1722 = vpop.xlane.xlu0 %1721
  %v1723 = vlaneseq
  %v1724 = vand.u32 %v1723, 127
  %vm1725 = vcmp.eq.s32.totalorder %v1724, 0
  %vm1726 = vcmp.eq.s32.totalorder %v1724, 1
  %v1727 = vsel %vm1726, %v1722, 0.0
  %v1728 = vsel %vm1725, %v1719, %v1727
  %1729 = vst [vmem:[%s16] sm:$0xff] %v1728
  // Predicated region
  $region66: #{bpnet_forward.1} parent=0 // pred_check
    _
  $region67: #{bpnet_forward.1} parent=0 // pred_check_branch
    %1731 = sbr.rel (0) target = $region69
  $region68: #{bpnet_forward.1} parent=0 // pred_region
    _
  $region69: #{bpnet_forward.1} parent=0 // pred_fallthru
    _
  // Predicated region
  $region70: #{bpnet_forward.1} parent=0 // pred_check
    _
  $region71: #{bpnet_forward.1} parent=0 // pred_check_branch
    %1733 = sbr.rel (0) target = $region73
  $region72: #{bpnet_forward.1} parent=0 // pred_region
    _
  $region73: #{bpnet_forward.1} parent=0 // pred_fallthru
    _

</llo_original>
